<compile_context>
chip_gen: v6e
topology: v6e:2x2x1
jax: 0.10.0
libtpu: 0.0.40
codegen_flags: <defaults>
</compile_context>

<pallas_src>
import math

import jax
import jax.numpy as jnp
from jax import lax
from jax.experimental import pallas as pl
from jax.experimental.pallas import tpu as pltpu


# ----------------------------------------------------------------------------
# Pallas kernels
# ----------------------------------------------------------------------------
def _linear_kernel(x_ref, w_ref, b_ref, o_ref):
    # x_ref: (1, TV, Cin), w_ref: (Cin, Cout) (= torch W.T), b_ref: (1, Cout)
    y = jnp.dot(x_ref[0], w_ref[...], preferred_element_type=jnp.float32)
    o_ref[0] = (y + b_ref[...]).astype(o_ref.dtype)


def _basis_kernel(gX_ref, gY_ref, evc_ref, evr_ref, basis_ref, accX, accY):
    """Precompute basis[b] = [evecs ; gradX@evecs ; gradY@evecs] (bf16), tiled over
    vertex rows (i) and the contraction axis (j) with f32 accumulators."""
    j = pl.program_id(2)

    @pl.when(j == 0)
    def _():
        accX[...] = jnp.zeros_like(accX)
        accY[...] = jnp.zeros_like(accY)

    ev_cols = evc_ref[0]                                            # (tile_vc, K) bf16
    accX[...] += jnp.dot(gX_ref[0], ev_cols, preferred_element_type=jnp.float32)
    accY[...] += jnp.dot(gY_ref[0], ev_cols, preferred_element_type=jnp.float32)

    @pl.when(j == pl.num_programs(2) - 1)
    def _():
        basis_ref[0, 0] = evr_ref[0]                                # evecs rows (bf16)
        basis_ref[0, 1] = accX[...].astype(basis_ref.dtype)
        basis_ref[0, 2] = accY[...].astype(basis_ref.dtype)


def _to_basis_kernel(x_ref, evw_ref, evals_ref, time_ref, spec_ref, acc_ref):
    """Accumulates x_spec = (mass*evecs)^T @ x over V tiles, then applies the
    learned diffusion coefficients: spec = exp(-evals*time) * x_spec."""
    vv = pl.program_id(1)

    @pl.when(vv == 0)
    def _():
        acc_ref[...] = jnp.zeros_like(acc_ref)

    # Contract dim 0 (vertices) of (mass*evecs) against dim 0 of x -> (K, C);
    # the MXU consumes the operand directly, no materialized transpose.
    acc_ref[...] += lax.dot_general(
        evw_ref[0], x_ref[0],
        dimension_numbers=(((0,), (0,)), ((), ())),
        preferred_element_type=jnp.float32)

    @pl.when(vv == pl.num_programs(1) - 1)
    def _():
        coefs = jnp.exp(-evals_ref[0] * time_ref[...])              # (K,1)*(1,C)->(K,C)
        spec_ref[0] = (coefs * acc_ref[...]).astype(spec_ref.dtype)


def _make_block_kernel(with_head):
    """Per-vertex-tile part of one DiffusionNetBlock: from_basis + spectral
    gradients + rotation features + MiniMLP + residual (+ optional fused final
    linear for the last block)."""

    def kernel(spec_ref, x_ref, basis_ref, Acat_ref, W0_ref, b0_ref,
               W1_ref, b1_ref, W2_ref, b2_ref, *rest):
        if with_head:
            hw_ref, hb_ref, o_ref = rest
        else:
            (o_ref,) = rest

        C = x_ref.shape[-1]
        TV = x_ref.shape[1]
        K = basis_ref.shape[-1]

        x = x_ref[0]                                                # (TV, C) f32
        spec_bf = spec_ref[0].astype(jnp.bfloat16)                  # (K, C)

        # One fused (3TV, K) @ (K, C) matmul for from_basis + both gradients.
        eg = basis_ref[0].reshape(3 * TV, K)                        # bf16, layout-free
        y3 = jnp.dot(eg, spec_bf, preferred_element_type=jnp.float32)
        x_diffuse = y3[:TV]                                         # evecs @ spec
        gx = y3[TV:2 * TV]                                          # gradX @ x_diffuse
        gy = y3[2 * TV:]                                            # gradY @ x_diffuse

        # SpatialGradientFeatures (with_gradient_rotations=True), A_re|A_im merged.
        gxA = jnp.dot(gx, Acat_ref[...], preferred_element_type=jnp.float32)  # (TV,2C)
        gyA = jnp.dot(gy, Acat_ref[...], preferred_element_type=jnp.float32)
        b_real = gxA[:, :C] - gyA[:, C:]
        b_imag = gyA[:, :C] + gxA[:, C:]
        grad_feat = jnp.tanh(gx * b_real + gy * b_imag)             # (TV, C)

        # MiniMLP layer 0 as three accumulating C-deep matmuls (no staging scratch).
        w0 = W0_ref[...]                                            # (3C, C)
        h = (jnp.dot(x, w0[:C], preferred_element_type=jnp.float32)
             + jnp.dot(x_diffuse, w0[C:2 * C], preferred_element_type=jnp.float32)
             + jnp.dot(grad_feat, w0[2 * C:], preferred_element_type=jnp.float32)
             + b0_ref[...])
        h = jnp.maximum(h, 0.0)
        h = jnp.dot(h, W1_ref[...], preferred_element_type=jnp.float32) + b1_ref[...]
        h = jnp.maximum(h, 0.0)
        h = jnp.dot(h, W2_ref[...], preferred_element_type=jnp.float32) + b2_ref[...]

        out = h + x                                                 # residual
        if with_head:                                               # fused last_lin
            out = jnp.dot(out, hw_ref[...], preferred_element_type=jnp.float32) + hb_ref[...]
        o_ref[0] = out.astype(o_ref.dtype)

    return kernel


# ----------------------------------------------------------------------------
# Wrappers (pallas_call plumbing)
# ----------------------------------------------------------------------------
def _block_bytes(shape, dtype):
    return math.prod(shape) * jnp.dtype(dtype).itemsize


def _vmem_limit(blocks, scratch_bytes=0):
    """Scoped-VMEM budget from the actual per-step block bytes (x2 double-buffer)
    plus scratch and compiler headroom.  Tiles are chosen small enough that the
    need stays well below v7x's 64 MiB physical VMEM."""
    need = 2 * sum(_block_bytes(s, d) for s, d in blocks) + scratch_bytes + (8 << 20)
    return int(min(max(need, 32 << 20), 96 << 20))


def _pick_tile_rows(V):
    # Second-minor (sublane) tile: multiple of 8, or the full dim.
    for t in (1024, 512, 256, 128, 64, 32, 16, 8):
        if V % t == 0:
            return t
    return V


def _pick_tile_lanes(V):
    # Lane (last-dim) tile for the contraction axis: multiple of 128, or full dim.
    for t in (2048, 1024, 512, 256, 128):
        if V % t == 0:
            return t
    return V


def linear(x, w_t, b, tile_v):
    """y = x @ w_t + b, tiled over (batch, vertex-tile). x: (B,V,Cin), w_t: (Cin,Cout)."""
    B, V, Cin = x.shape
    Cout = w_t.shape[1]
    blocks = [((tile_v, Cin), x.dtype), ((Cin, Cout), w_t.dtype),
              ((1, Cout), b.dtype), ((tile_v, Cout), x.dtype)]
    return pl.pallas_call(
        _linear_kernel,
        out_shape=jax.ShapeDtypeStruct((B, V, Cout), x.dtype),
        grid=(B, V // tile_v),
        in_specs=[
            pl.BlockSpec((1, tile_v, Cin), lambda bb, vv: (bb, vv, 0)),
            pl.BlockSpec((Cin, Cout), lambda bb, vv: (0, 0)),
            pl.BlockSpec((1, Cout), lambda bb, vv: (0, 0)),
        ],
        out_specs=pl.BlockSpec((1, tile_v, Cout), lambda bb, vv: (bb, vv, 0)),
        compiler_params=pltpu.CompilerParams(
            dimension_semantics=("parallel", "parallel"),
            vmem_limit_bytes=_vmem_limit(blocks)),
    )(x, w_t, b)


def precompute_basis(gradX_bf, gradY_bf, evecs_bf, tile_v, tile_vc):
    """basis[:, 0] = evecs, basis[:, 1] = gradX@evecs, basis[:, 2] = gradY@evecs,
    all bf16, computed once per forward with contraction tiling (VMEM bounded by
    tile sizes, not V)."""
    B, V, _ = gradX_bf.shape
    K = evecs_bf.shape[-1]
    blocks = [((tile_v, tile_vc), jnp.bfloat16), ((tile_v, tile_vc), jnp.bfloat16),
              ((tile_vc, K), jnp.bfloat16), ((tile_v, K), jnp.bfloat16),
              ((3, tile_v, K), jnp.bfloat16)]
    scratch = 2 * _block_bytes((tile_v, K), jnp.float32)
    return pl.pallas_call(
        _basis_kernel,
        out_shape=jax.ShapeDtypeStruct((B, 3, V, K), jnp.bfloat16),
        grid=(B, V // tile_v, V // tile_vc),
        in_specs=[
            pl.BlockSpec((1, tile_v, tile_vc), lambda b, i, j: (b, i, j)),  # gradX
            pl.BlockSpec((1, tile_v, tile_vc), lambda b, i, j: (b, i, j)),  # gradY
            pl.BlockSpec((1, tile_vc, K), lambda b, i, j: (b, j, 0)),       # evecs cols
            pl.BlockSpec((1, tile_v, K), lambda b, i, j: (b, i, 0)),        # evecs rows
        ],
        out_specs=pl.BlockSpec((1, 3, tile_v, K), lambda b, i, j: (b, 0, i, 0)),
        scratch_shapes=[pltpu.VMEM((tile_v, K), jnp.float32),
                        pltpu.VMEM((tile_v, K), jnp.float32)],
        compiler_params=pltpu.CompilerParams(
            dimension_semantics=("parallel", "parallel", "arbitrary"),
            vmem_limit_bytes=_vmem_limit(blocks, scratch)),
    )(gradX_bf, gradY_bf, evecs_bf, evecs_bf)


def spectral_project(x, evecs_w, evals, time, tile_v):
    """spec = exp(-evals*time) * ((mass*evecs)^T @ x), shape (B, K, C)."""
    B, V, C = x.shape
    K = evecs_w.shape[-1]
    blocks = [((tile_v, C), jnp.float32), ((tile_v, K), jnp.float32),
              ((K, 1), jnp.float32), ((1, C), jnp.float32), ((K, C), jnp.float32)]
    scratch = _block_bytes((K, C), jnp.float32)
    return pl.pallas_call(
        _to_basis_kernel,
        out_shape=jax.ShapeDtypeStruct((B, K, C), jnp.float32),
        grid=(B, V // tile_v),
        in_specs=[
            pl.BlockSpec((1, tile_v, C), lambda bb, vv: (bb, vv, 0)),   # x
            pl.BlockSpec((1, tile_v, K), lambda bb, vv: (bb, vv, 0)),   # mass * evecs
            pl.BlockSpec((1, K, 1), lambda bb, vv: (bb, 0, 0)),         # evals
            pl.BlockSpec((1, C), lambda bb, vv: (0, 0)),                # time
        ],
        out_specs=pl.BlockSpec((1, K, C), lambda bb, vv: (bb, 0, 0)),
        scratch_shapes=[pltpu.VMEM((K, C), jnp.float32)],
        compiler_params=pltpu.CompilerParams(
            dimension_semantics=("parallel", "arbitrary"),
            vmem_limit_bytes=_vmem_limit(blocks, scratch)),
    )(x, evecs_w, evals, time)       # <- order matches in_specs / kernel args


def block_spatial(spec, x, basis, blk, head, tile_v):
    """from_basis + gradient features + MiniMLP + residual for one block;
    if `head` is given, also applies the final linear as an epilogue."""
    B, V, C = x.shape
    K = basis.shape[-1]
    with_head = head is not None
    Cout = head[0].shape[1] if with_head else C

    in_specs = [
        pl.BlockSpec((1, K, C), lambda bb, vv: (bb, 0, 0)),           # spec (diffused)
        pl.BlockSpec((1, tile_v, C), lambda bb, vv: (bb, vv, 0)),     # x (block input)
        pl.BlockSpec((1, 3, tile_v, K), lambda bb, vv: (bb, 0, vv, 0)),  # [ev|gXe|gYe]
        pl.BlockSpec((C, 2 * C), lambda bb, vv: (0, 0)),              # [A_re^T | A_im^T]
        pl.BlockSpec((3 * C, C), lambda bb, vv: (0, 0)),              # W0^T
        pl.BlockSpec((1, C), lambda bb, vv: (0, 0)),                  # b0
        pl.BlockSpec((C, C), lambda bb, vv: (0, 0)),                  # W1^T
        pl.BlockSpec((1, C), lambda bb, vv: (0, 0)),                  # b1
        pl.BlockSpec((C, C), lambda bb, vv: (0, 0)),                  # W2^T
        pl.BlockSpec((1, C), lambda bb, vv: (0, 0)),                  # b2
    ]
    args = [spec, x, basis, blk['Acat'], blk['W0T'], blk['b0'],
            blk['W1T'], blk['b1'], blk['W2T'], blk['b2']]
    blocks = [((K, C), jnp.float32), ((tile_v, C), jnp.float32),
              ((3, tile_v, K), jnp.bfloat16), ((C, 2 * C), jnp.float32),
              ((3 * C, C), jnp.float32), ((3, C, C), jnp.float32),
              ((4, 1, C), jnp.float32), ((tile_v, Cout), jnp.float32)]
    if with_head:
        in_specs += [
            pl.BlockSpec((C, Cout), lambda bb, vv: (0, 0)),           # last_lin W^T (padded)
            pl.BlockSpec((1, Cout), lambda bb, vv: (0, 0)),           # last_lin b (padded)
        ]
        args += [head[0], head[1]]
        blocks += [((C, Cout), jnp.float32), ((1, Cout), jnp.float32)]

    return pl.pallas_call(
        _make_block_kernel(with_head),
        out_shape=jax.ShapeDtypeStruct((B, V, Cout), jnp.float32),
        grid=(B, V // tile_v),
        in_specs=in_specs,
        out_specs=pl.BlockSpec((1, tile_v, Cout), lambda bb, vv: (bb, vv, 0)),
        compiler_params=pltpu.CompilerParams(
            dimension_semantics=("parallel", "parallel"),
            vmem_limit_bytes=_vmem_limit(blocks)),
    )(*args)


# ----------------------------------------------------------------------------
# Parameter prep (once per set of weights, not per forward)
# ----------------------------------------------------------------------------
def prepare_params(params):
    C = params['first_w'].shape[1]
    Cout = params['last_w'].shape[1]
    Cpad = max(128, ((Cout + 127) // 128) * 128)   # lane-dense fused epilogue
    head_w = jnp.zeros((C, Cpad), jnp.float32).at[:, :Cout].set(params['last_w'])
    head_b = jnp.zeros((1, Cpad), jnp.float32).at[:, :Cout].set(params['last_b'])
    blocks = []
    for blk in params['blocks']:
        blocks.append(dict(
            time=blk['time'],
            Acat=jnp.concatenate([blk['AreT'], blk['AimT']], axis=1),   # (C, 2C)
            W0T=blk['W0T'], b0=blk['b0'],
            W1T=blk['W1T'], b1=blk['b1'],
            W2T=blk['W2T'], b2=blk['b2']))
    return dict(first_w=params['first_w'], first_b=params['first_b'],
                blocks=blocks, head_w=head_w, head_b=head_b, C_out=Cout)


# ----------------------------------------------------------------------------
# Forward
# ----------------------------------------------------------------------------
def diffusion_net_forward(prep, x_in, mass, evals, evecs, gradX, gradY,
                          *, tile_v=None, tile_vc=None):
    """DiffusionNet.forward with default options (outputs_at='vertices')."""
    B, V, _ = x_in.shape
    if tile_v is None:
        tile_v = _pick_tile_rows(V)
    if tile_vc is None:
        tile_vc = _pick_tile_lanes(V)
    assert V % tile_v == 0 and V % tile_vc == 0

    # Geometry preprocessing, shared by every block (kills the (V,V) operands and
    # feeds the MXU in bf16).
    basis = precompute_basis(gradX.astype(jnp.bfloat16), gradY.astype(jnp.bfloat16),
                             evecs.astype(jnp.bfloat16), tile_v, tile_vc)
    # Fold mass into evecs once: evecs^T diag(mass) x == (mass*evecs)^T x.
    evecs_w = evecs * mass                                           # (B, V, K) f32

    x = linear(x_in, prep['first_w'], prep['first_b'], tile_v)
    n_block = len(prep['blocks'])
    for i, blk in enumerate(prep['blocks']):
        time = jnp.maximum(blk['time'], 1e-12)   # clamp like the module's forward
        spec = spectral_project(x, evecs_w, evals, time, tile_v)
        head = ((prep['head_w'], prep['head_b']) if i == n_block - 1 else None)
        x = block_spatial(spec, x, basis, blk, head, tile_v)
    if n_block == 0:   # degenerate case: standalone final linear
        x = linear(x, prep['head_w'], prep['head_b'], tile_v)
    return x[..., :prep['C_out']]   # outputs_at == 'vertices', last_activation == None


# ----------------------------------------------------------------------------
# Deterministic parameter init (shapes per the module's __init__)
# ----------------------------------------------------------------------------
def init_params(key, C_in, C_out, C_width, n_block):
    keys = list(jax.random.split(key, 4 + 8 * n_block))
    ki = iter(keys)

    def lin_init(k, fan_in, fan_out):
        kw, kb = jax.random.split(k)
        bound = 1.0 / (fan_in ** 0.5)
        # stored directly as (in, out) == torch_weight.T
        w = jax.random.uniform(kw, (fan_in, fan_out), jnp.float32, -bound, bound)
        b = jax.random.uniform(kb, (1, fan_out), jnp.float32, -bound, bound)
        return w, b

    params = {}
    params['first_w'], params['first_b'] = lin_init(next(ki), C_in, C_width)
    params['last_w'], params['last_b'] = lin_init(next(ki), C_width, C_out)

    C = C_width
    blocks = []
    for _ in range(n_block):
        blk = {}
        # LearnedTimeDiffusion: module inits time to 0 and clamps min=1e-12 in
        # forward; use small positive values here to exercise the exp path.
        blk['time'] = jax.random.uniform(next(ki), (1, C), jnp.float32, 0.0, 0.5)
        bound = 1.0 / (C ** 0.5)
        blk['AreT'] = jax.random.uniform(next(ki), (C, C), jnp.float32, -bound, bound)
        blk['AimT'] = jax.random.uniform(next(ki), (C, C), jnp.float32, -bound, bound)
        # MiniMLP sizes: [3C, C, C, C]  (mlp_hidden_dims default [C, C])
        blk['W0T'], blk['b0'] = lin_init(next(ki), 3 * C, C)
        blk['W1T'], blk['b1'] = lin_init(next(ki), C, C)
        blk['W2T'], blk['b2'] = lin_init(next(ki), C, C)
        blocks.append(blk)
    params['blocks'] = blocks
    return params


# ----------------------------------------------------------------------------
# Pure-JAX reference (faithful to the PyTorch module, for correctness check)
# ----------------------------------------------------------------------------
def reference_forward(params, x_in, mass, evals, evecs, gradX, gradY):
    x = x_in @ params['first_w'] + params['first_b']
    for blk in params['blocks']:
        time = jnp.maximum(blk['time'], 1e-12)
        x_spec = jnp.einsum('bvk,bvc->bkc', evecs, mass * x)
        coefs = jnp.exp(-evals * time[None])                      # (B,K,C)
        x_diffuse = jnp.einsum('bvk,bkc->bvc', evecs, coefs * x_spec)
        gx = jnp.einsum('bvw,bwc->bvc', gradX, x_diffuse)
        gy = jnp.einsum('bvw,bwc->bvc', gradY, x_diffuse)
        b_real = gx @ blk['AreT'] - gy @ blk['AimT']
        b_imag = gy @ blk['AreT'] + gx @ blk['AimT']
        gf = jnp.tanh(gx * b_real + gy * b_imag)
        feat = jnp.concatenate([x, x_diffuse, gf], axis=-1)
        h = jax.nn.relu(feat @ blk['W0T'] + blk['b0'])
        h = jax.nn.relu(h @ blk['W1T'] + blk['b1'])
        h = h @ blk['W2T'] + blk['b2']
        x = h + x
    return x @ params['last_w'] + params['last_b']


# ----------------------------------------------------------------------------
if __name__ == "__main__":
    B, V, K = 2, 256, 16
    C_in, C_out, C_width, N_block = 4, 3, 128, 2   # C_width = module default (lane-dense)

    key = jax.random.PRNGKey(0)
    (k_param, k_x, k_mass, k_evals, k_evecs, k_gx, k_gy) = jax.random.split(key, 7)

    params = init_params(k_param, C_in, C_out, C_width, N_block)
    prep = prepare_params(params)

    x_in = jax.random.normal(k_x, (B, V, C_in), jnp.float32)
    mass = jnp.abs(jax.random.normal(k_mass, (B, V, 1), jnp.float32)) + 0.1
    evals = jnp.abs(jax.random.normal(k_evals, (B, K, 1), jnp.float32))
    # scale like orthonormal eigenvectors / sparse gradient operators
    evecs = jax.random.normal(k_evecs, (B, V, K), jnp.float32) / (V ** 0.5)
    gradX = jax.random.normal(k_gx, (B, V, V), jnp.float32) / (V ** 0.5)
    gradY = jax.random.normal(k_gy, (B, V, V), jnp.float32) / (V ** 0.5)

    out = diffusion_net_forward(prep, x_in, mass, evals, evecs, gradX, gradY)
    out = jax.block_until_ready(out)
    assert out.shape == (B, V, C_out), out.shape
    assert bool(jnp.all(jnp.isfinite(out))), "non-finite values in kernel output"

    ref = reference_forward(params, x_in, mass, evals, evecs, gradX, gradY)
    max_err = float(jnp.max(jnp.abs(out - ref)))
    # Geometry operands run in bf16 (f32 accumulation) -> compare at bf16-appropriate
    # tolerance against the full-f32 reference.
    assert jnp.allclose(out, ref, rtol=2e-2, atol=2e-2), f"max_err={max_err}"

    print("KERNEL_OK")
</pallas_src>

<mosaic_0001>
module attributes {stable_mosaic.version = 11 : i64} {
  func.func @_basis_kernel(%arg0: i32, %arg1: i32, %arg2: i32, %arg3: memref<1x256x256xbf16, #tpu.memory_space<vmem>>, %arg4: memref<1x256x256xbf16, #tpu.memory_space<vmem>>, %arg5: memref<1x256x16xbf16, #tpu.memory_space<vmem>>, %arg6: memref<1x256x16xbf16, #tpu.memory_space<vmem>>, %arg7: memref<1x3x256x16xbf16, #tpu.memory_space<vmem>>, %arg8: memref<256x16xf32, #tpu.memory_space<vmem>>, %arg9: memref<256x16xf32, #tpu.memory_space<vmem>>) attributes {dimension_semantics = [#tpu.dimension_semantics<parallel>, #tpu.dimension_semantics<parallel>, #tpu.dimension_semantics<arbitrary>], iteration_bounds = array<i64: 2, 1, 1>, scalar_prefetch = 0 : i64, scratch_operands = 2 : i64, tpu.core_type = #tpu.core_type<tc>, window_params = [{transform_indices = @transform_0, window_bounds = array<i64: 1, 256, 256>}, {transform_indices = @transform_1, window_bounds = array<i64: 1, 256, 256>}, {transform_indices = @transform_2, window_bounds = array<i64: 1, 256, 16>}, {transform_indices = @transform_3, window_bounds = array<i64: 1, 256, 16>}, {transform_indices = @transform_4, window_bounds = array<i64: 1, 3, 256, 16>}]} {
    %c0_i32 = arith.constant 0 : i32
    %0 = arith.cmpi eq, %arg2, %c0_i32 : i32
    %1 = arith.extui %0 : i1 to i32
    %c0_i32_0 = arith.constant 0 : i32
    %2 = arith.cmpi ne, %1, %c0_i32_0 : i32
    scf.if %2 {
      %cst_20 = arith.constant 0.000000e+00 : f32
      %20 = vector.broadcast %cst_20 : f32 to vector<256x16xf32>
      %c0_21 = arith.constant 0 : index
      %c0_22 = arith.constant 0 : index
      %21 = vector.load %arg8[%c0_21, %c0_22] : memref<256x16xf32, #tpu.memory_space<vmem>>, vector<256x16xf32>
      tpu.vector_store %arg8[%c0_21, %c0_22], %20 {strides = array<i32>} : memref<256x16xf32, #tpu.memory_space<vmem>>, vector<256x16xf32>,
      %cst_23 = arith.constant 0.000000e+00 : f32
      %22 = vector.broadcast %cst_23 : f32 to vector<256x16xf32>
      %c0_24 = arith.constant 0 : index
      %c0_25 = arith.constant 0 : index
      %23 = vector.load %arg9[%c0_24, %c0_25] : memref<256x16xf32, #tpu.memory_space<vmem>>, vector<256x16xf32>
      tpu.vector_store %arg9[%c0_24, %c0_25], %22 {strides = array<i32>} : memref<256x16xf32, #tpu.memory_space<vmem>>, vector<256x16xf32>,
    } else {
    }
    %c0 = arith.constant 0 : index
    %c0_1 = arith.constant 0 : index
    %c0_2 = arith.constant 0 : index
    %3 = vector.load %arg5[%c0, %c0_1, %c0_2] : memref<1x256x16xbf16, #tpu.memory_space<vmem>>, vector<1x256x16xbf16>
    %4 = vector.shape_cast %3 : vector<1x256x16xbf16> to vector<256x16xbf16>
    %c0_3 = arith.constant 0 : index
    %c0_4 = arith.constant 0 : index
    %5 = vector.load %arg8[%c0_3, %c0_4] : memref<256x16xf32, #tpu.memory_space<vmem>>, vector<256x16xf32>
    %c0_5 = arith.constant 0 : index
    %c0_6 = arith.constant 0 : index
    %c0_7 = arith.constant 0 : index
    %6 = vector.load %arg3[%c0_5, %c0_6, %c0_7] : memref<1x256x256xbf16, #tpu.memory_space<vmem>>, vector<1x256x256xbf16>
    %7 = vector.shape_cast %6 : vector<1x256x256xbf16> to vector<256x256xbf16>
    %cst = arith.constant dense<0.000000e+00> : vector<256x16xf32>
    %8 = tpu.matmul %7, %4, %cst {dimension_numbers = #tpu.dot_dimension_numbers<[1], [0], [0], [1], [0, 0, 1, 1], [], []>} : vector<256x256xbf16>, vector<256x16xbf16>, vector<256x16xf32> -> vector<256x16xf32>
    %9 = arith.addf %5, %8 : vector<256x16xf32>
    %c0_8 = arith.constant 0 : index
    %c0_9 = arith.constant 0 : index
    %10 = vector.load %arg8[%c0_8, %c0_9] : memref<256x16xf32, #tpu.memory_space<vmem>>, vector<256x16xf32>
    tpu.vector_store %arg8[%c0_8, %c0_9], %9 {strides = array<i32>} : memref<256x16xf32, #tpu.memory_space<vmem>>, vector<256x16xf32>,
    %c0_10 = arith.constant 0 : index
    %c0_11 = arith.constant 0 : index
    %11 = vector.load %arg9[%c0_10, %c0_11] : memref<256x16xf32, #tpu.memory_space<vmem>>, vector<256x16xf32>
    %c0_12 = arith.constant 0 : index
    %c0_13 = arith.constant 0 : index
    %c0_14 = arith.constant 0 : index
    %12 = vector.load %arg4[%c0_12, %c0_13, %c0_14] : memref<1x256x256xbf16, #tpu.memory_space<vmem>>, vector<1x256x256xbf16>
    %13 = vector.shape_cast %12 : vector<1x256x256xbf16> to vector<256x256xbf16>
    %cst_15 = arith.constant dense<0.000000e+00> : vector<256x16xf32>
    %14 = tpu.matmul %13, %4, %cst_15 {dimension_numbers = #tpu.dot_dimension_numbers<[1], [0], [0], [1], [0, 0, 1, 1], [], []>} : vector<256x256xbf16>, vector<256x16xbf16>, vector<256x16xf32> -> vector<256x16xf32>
    %15 = arith.addf %11, %14 : vector<256x16xf32>
    %c0_16 = arith.constant 0 : index
    %c0_17 = arith.constant 0 : index
    %16 = vector.load %arg9[%c0_16, %c0_17] : memref<256x16xf32, #tpu.memory_space<vmem>>, vector<256x16xf32>
    tpu.vector_store %arg9[%c0_16, %c0_17], %15 {strides = array<i32>} : memref<256x16xf32, #tpu.memory_space<vmem>>, vector<256x16xf32>,
    %c0_i32_18 = arith.constant 0 : i32
    %17 = arith.cmpi eq, %arg2, %c0_i32_18 : i32
    %18 = arith.extui %17 : i1 to i32
    %c0_i32_19 = arith.constant 0 : i32
    %19 = arith.cmpi ne, %18, %c0_i32_19 : i32
    scf.if %19 {
      %c0_20 = arith.constant 0 : index
      %c0_21 = arith.constant 0 : index
      %c0_22 = arith.constant 0 : index
      %20 = vector.load %arg6[%c0_20, %c0_21, %c0_22] : memref<1x256x16xbf16, #tpu.memory_space<vmem>>, vector<1x256x16xbf16>
      %21 = vector.shape_cast %20 : vector<1x256x16xbf16> to vector<256x16xbf16>
      %c0_23 = arith.constant 0 : index
      %c0_24 = arith.constant 0 : index
      %c0_25 = arith.constant 0 : index
      %c0_26 = arith.constant 0 : index
      %22 = vector.load %arg7[%c0_23, %c0_24, %c0_25, %c0_26] : memref<1x3x256x16xbf16, #tpu.memory_space<vmem>>, vector<1x1x256x16xbf16>
      %23 = vector.shape_cast %22 : vector<1x1x256x16xbf16> to vector<256x16xbf16>
      %24 = vector.shape_cast %21 : vector<256x16xbf16> to vector<1x1x256x16xbf16>
      tpu.vector_store %arg7[%c0_23, %c0_24, %c0_25, %c0_26], %24 {strides = array<i32>} : memref<1x3x256x16xbf16, #tpu.memory_space<vmem>>, vector<1x1x256x16xbf16>,
      %c0_27 = arith.constant 0 : index
      %c0_28 = arith.constant 0 : index
      %25 = vector.load %arg8[%c0_27, %c0_28] : memref<256x16xf32, #tpu.memory_space<vmem>>, vector<256x16xf32>
      %26 = arith.truncf %25 : vector<256x16xf32> to vector<256x16xbf16>
      %c0_29 = arith.constant 0 : index
      %c1 = arith.constant 1 : index
      %c0_30 = arith.constant 0 : index
      %c0_31 = arith.constant 0 : index
      %27 = vector.load %arg7[%c0_29, %c1, %c0_30, %c0_31] : memref<1x3x256x16xbf16, #tpu.memory_space<vmem>>, vector<1x1x256x16xbf16>
      %28 = vector.shape_cast %27 : vector<1x1x256x16xbf16> to vector<256x16xbf16>
      %29 = vector.shape_cast %26 : vector<256x16xbf16> to vector<1x1x256x16xbf16>
      tpu.vector_store %arg7[%c0_29, %c1, %c0_30, %c0_31], %29 {strides = array<i32>} : memref<1x3x256x16xbf16, #tpu.memory_space<vmem>>, vector<1x1x256x16xbf16>,
      %c0_32 = arith.constant 0 : index
      %c0_33 = arith.constant 0 : index
      %30 = vector.load %arg9[%c0_32, %c0_33] : memref<256x16xf32, #tpu.memory_space<vmem>>, vector<256x16xf32>
      %31 = arith.truncf %30 : vector<256x16xf32> to vector<256x16xbf16>
      %c0_34 = arith.constant 0 : index
      %c2 = arith.constant 2 : index
      %c0_35 = arith.constant 0 : index
      %c0_36 = arith.constant 0 : index
      %32 = vector.load %arg7[%c0_34, %c2, %c0_35, %c0_36] : memref<1x3x256x16xbf16, #tpu.memory_space<vmem>>, vector<1x1x256x16xbf16>
      %33 = vector.shape_cast %32 : vector<1x1x256x16xbf16> to vector<256x16xbf16>
      %34 = vector.shape_cast %31 : vector<256x16xbf16> to vector<1x1x256x16xbf16>
      tpu.vector_store %arg7[%c0_34, %c2, %c0_35, %c0_36], %34 {strides = array<i32>} : memref<1x3x256x16xbf16, #tpu.memory_space<vmem>>, vector<1x1x256x16xbf16>,
    } else {
    }
    return
  }
  func.func @transform_0(%arg0: i32, %arg1: i32, %arg2: i32) -> (i32, i32, i32) {
    %c0_i32 = arith.constant 0 : i32
    return %arg0, %arg1, %arg2 : i32, i32, i32
  }
  func.func @transform_1(%arg0: i32, %arg1: i32, %arg2: i32) -> (i32, i32, i32) {
    %c0_i32 = arith.constant 0 : i32
    return %arg0, %arg1, %arg2 : i32, i32, i32
  }
  func.func @transform_2(%arg0: i32, %arg1: i32, %arg2: i32) -> (i32, i32, i32) {
    %c0_i32 = arith.constant 0 : i32
    %c0_i32_0 = arith.constant 0 : i32
    return %arg0, %arg2, %c0_i32 : i32, i32, i32
  }
  func.func @transform_3(%arg0: i32, %arg1: i32, %arg2: i32) -> (i32, i32, i32) {
    %c0_i32 = arith.constant 0 : i32
    %c0_i32_0 = arith.constant 0 : i32
    return %arg0, %arg1, %c0_i32 : i32, i32, i32
  }
  func.func @transform_4(%arg0: i32, %arg1: i32, %arg2: i32) -> (i32, i32, i32, i32) {
    %c0_i32 = arith.constant 0 : i32
    %c0_i32_0 = arith.constant 0 : i32
    %c0_i32_1 = arith.constant 0 : i32
    return %arg0, %c0_i32, %arg1, %c0_i32_0 : i32, i32, i32, i32
  }
}

</mosaic_0001>

<llo_original>
// kernel: tpu_custom_call.1
$region0: #{tpu_custom_call.1}
  #allocation0 [shape = 'u32[]', space=smem, size = 0x4, offset = 0x4, fixed_abs, tag = 'smem constant byte address 0x4 - core index']
  #allocation1 [shape = 'u32[144,128]{1,0:T(1,128)}', space=vmem, size = 0x12000, scoped, tag = 'internal scratch']
  #allocation2 [shape = 'f32[256,16]{1,0:T(8,128)}', space=vmem, size = 0x20000, scoped, tag = 'scratch operand']
  #allocation3 [shape = 'f32[256,16]{1,0:T(8,128)}', space=vmem, size = 0x20000, scoped, tag = 'scratch operand']
  %s0 = inlined_call_operand.vmem [shape: bf16[2,256,256], index: 0, kind: input, shape index: {}]
  %s1 = inlined_call_operand.hbm [shape: bf16[2,256,256], index: 1, kind: input, shape index: {}]
  %s2 = inlined_call_operand.vmem [shape: bf16[2,256,16], index: 2, kind: input, shape index: {}]
  %s3 = inlined_call_operand.vmem [shape: bf16[2,256,16], index: 3, kind: input, shape index: {}]
  %s4 = inlined_call_operand.vmem [shape: bf16[2,3,256,16], index: 4, kind: output, shape index: {}]
  %s5 = sld [smem:[#allocation0]]
  $region61: #{tpu_custom_call.1} parent=0
    _
  %s7 = ssub.s32 1, %s5
  %s8 = scalar_select 0, %s7, %s5
  $region1: #{tpu_custom_call.1} parent=0
    #allocation4 [shape = 'u8[262144]{0}', space=vmem, size = 0x40000, scoped, tag = 'input window, operand 1']
    #allocation5 [shape = 's32[2]{0}', space=sflag, size = 0x8, scoped, tag = 'scoped memory for tpu_custom_call.1']
    %9 = vsyncpa [#allocation5], 0
    %s10 = scalar_lea.sflag [#allocation5], 1
    %11 = vsyncpa %s10, 0
    loop: start=0, step=1, limit=4
    $region2: #{tpu_custom_call.1} parent=1 // loop_pre_header
      _
    $region3: #{tpu_custom_call.1} parent=1 // loop_header
      %s13 = sphi 0, %s17
      %p14 = scmp.ge.s32.totalorder %s13, 4
      %s20 = sphi 0, %s39
      %s21 = sphi 0, %s35
      %s22 = sphi 0, %s31
      %s23 = sphi 0, %s20
      %s24 = sphi 0, %s21
      %s25 = sphi 0, %s22
      %s26 = sphi 0, %s23
      %s27 = sphi 0, %s24
      %s28 = sphi 0, %s25
      %s46 = sphi 0, %s48
      %s49 = sphi 0, %s46
      %s50 = sphi 0, %s49
      %s66 = sphi 0, %s50
      %s76 = sphi 0, %s78
      %s79 = sphi 0, %s76
      %s80 = sphi 0, %s79
      %s96 = sphi 0, %s80
      %s104 = sphi 0, %s106
      %s107 = sphi 0, %s104
      %s108 = sphi 0, %s107
      %s124 = sphi 0, %s108
      %s132 = sphi 0, %s134
      %s135 = sphi 0, %s132
      %s136 = sphi 0, %s135
      %s152 = sphi 0, %s136
      %s160 = sphi 0, %s162
      %s163 = sphi 0, %s160
      %s164 = sphi 0, %s163
      %s180 = sphi 0, %s164
    $region4: #{tpu_custom_call.1} parent=1 // loop_header_branch
      %16 = sbr.rel (%p14) target = $region8
    $region5: #{tpu_custom_call.1} parent=1 // loop_body
      %s18 = ssub.s32 %s13, 1
      %s19 = ssub.s32 %s13, 2
      %s29 = sadd.s32 1, %s22
      %p30 = scmp.ge.s32.totalorder %s29, 1
      %s31 = scalar_select %p30, 0, %s29
      %s32 = sadd.s32 1, %s21
      %s33 = scalar_select %p30, %s32, %s21
      %p34 = scmp.ge.s32.totalorder %s33, 1
      %s35 = scalar_select %p34, 0, %s33
      %s36 = sadd.s32 1, %s20
      %s37 = scalar_select %p34, %s36, %s20
      %p38 = scmp.ge.s32.totalorder %s37, 2
      %s39 = scalar_select %p38, 0, %s37
      %s40 = ssub.s32 %s20, %s39
      %s41 = ssub.s32 %s21, %s35
      %s42 = sor.u32 %s40, %s41
      %s43 = ssub.s32 %s22, %s31
      %s44 = sor.u32 %s42, %s43
      %p45 = scmp.eq.s32.totalorder %s44, 0
      %s47 = sadd.s32 %s46, 1
      %s48 = scalar_select %p45, %s46, %s47
      %p51 = pneg %p45
      %p52 = scmp.eq.s32.totalorder %s13, 1
      %p53 = por %p51, %p52
      %p54 = scmp.ne.s32.totalorder %s46, %s49
      %p55 = scmp.eq.s32.totalorder %s13, 0
      %p56 = por %p54, %p55
      %p57 = scmp.ne.s32.totalorder %s46, %s49
      %p58 = scmp.eq.s32.totalorder %s18, 1
      %p59 = por %p57, %p58
      %p60 = scmp.ne.s32.totalorder %s49, %s50
      %p61 = scmp.eq.s32.totalorder %s18, 0
      %p62 = por %p60, %p61
      %p63 = scmp.ne.s32.totalorder %s49, %s50
      %p64 = scmp.eq.s32.totalorder %s19, 1
      %p65 = por %p63, %p64
      %p67 = scmp.ne.s32.totalorder %s50, %s66
      %p68 = scmp.eq.s32.totalorder %s19, 0
      %p69 = por %p67, %p68
      %s70 = ssub.s32 %s20, %s39
      %s71 = ssub.s32 %s21, %s35
      %s72 = sor.u32 %s70, %s71
      %s73 = ssub.s32 %s22, %s31
      %s74 = sor.u32 %s72, %s73
      %p75 = scmp.eq.s32.totalorder %s74, 0
      %s77 = sadd.s32 %s76, 1
      %s78 = scalar_select %p75, %s76, %s77
      %p81 = pneg %p75
      %p82 = scmp.eq.s32.totalorder %s13, 1
      %p83 = por %p81, %p82
      %p84 = scmp.ne.s32.totalorder %s76, %s79
      %p85 = scmp.eq.s32.totalorder %s13, 0
      %p86 = por %p84, %p85
      %p87 = scmp.ne.s32.totalorder %s76, %s79
      %p88 = scmp.eq.s32.totalorder %s18, 1
      %p89 = por %p87, %p88
      %p90 = scmp.ne.s32.totalorder %s79, %s80
      %p91 = scmp.eq.s32.totalorder %s18, 0
      %p92 = por %p90, %p91
      %p93 = scmp.ne.s32.totalorder %s79, %s80
      %p94 = scmp.eq.s32.totalorder %s19, 1
      %p95 = por %p93, %p94
      %p97 = scmp.ne.s32.totalorder %s80, %s96
      %p98 = scmp.eq.s32.totalorder %s19, 0
      %p99 = por %p97, %p98
      %s100 = ssub.s32 %s20, %s39
      %s101 = ssub.s32 %s22, %s31
      %s102 = sor.u32 %s100, %s101
      %p103 = scmp.eq.s32.totalorder %s102, 0
      %s105 = sadd.s32 %s104, 1
      %s106 = scalar_select %p103, %s104, %s105
      %p109 = pneg %p103
      %p110 = scmp.eq.s32.totalorder %s13, 1
      %p111 = por %p109, %p110
      %p112 = scmp.ne.s32.totalorder %s104, %s107
      %p113 = scmp.eq.s32.totalorder %s13, 0
      %p114 = por %p112, %p113
      %p115 = scmp.ne.s32.totalorder %s104, %s107
      %p116 = scmp.eq.s32.totalorder %s18, 1
      %p117 = por %p115, %p116
      %p118 = scmp.ne.s32.totalorder %s107, %s108
      %p119 = scmp.eq.s32.totalorder %s18, 0
      %p120 = por %p118, %p119
      %p121 = scmp.ne.s32.totalorder %s107, %s108
      %p122 = scmp.eq.s32.totalorder %s19, 1
      %p123 = por %p121, %p122
      %p125 = scmp.ne.s32.totalorder %s108, %s124
      %p126 = scmp.eq.s32.totalorder %s19, 0
      %p127 = por %p125, %p126
      %s128 = ssub.s32 %s20, %s39
      %s129 = ssub.s32 %s21, %s35
      %s130 = sor.u32 %s128, %s129
      %p131 = scmp.eq.s32.totalorder %s130, 0
      %s133 = sadd.s32 %s132, 1
      %s134 = scalar_select %p131, %s132, %s133
      %p137 = pneg %p131
      %p138 = scmp.eq.s32.totalorder %s13, 1
      %p139 = por %p137, %p138
      %p140 = scmp.ne.s32.totalorder %s132, %s135
      %p141 = scmp.eq.s32.totalorder %s13, 0
      %p142 = por %p140, %p141
      %p143 = scmp.ne.s32.totalorder %s132, %s135
      %p144 = scmp.eq.s32.totalorder %s18, 1
      %p145 = por %p143, %p144
      %p146 = scmp.ne.s32.totalorder %s135, %s136
      %p147 = scmp.eq.s32.totalorder %s18, 0
      %p148 = por %p146, %p147
      %p149 = scmp.ne.s32.totalorder %s135, %s136
      %p150 = scmp.eq.s32.totalorder %s19, 1
      %p151 = por %p149, %p150
      %p153 = scmp.ne.s32.totalorder %s136, %s152
      %p154 = scmp.eq.s32.totalorder %s19, 0
      %p155 = por %p153, %p154
      %s156 = ssub.s32 %s20, %s39
      %s157 = ssub.s32 %s21, %s35
      %s158 = sor.u32 %s156, %s157
      %p159 = scmp.eq.s32.totalorder %s158, 0
      %s161 = sadd.s32 %s160, 1
      %s162 = scalar_select %p159, %s160, %s161
      %p165 = pneg %p159
      %p166 = scmp.eq.s32.totalorder %s13, 1
      %p167 = por %p165, %p166
      %p168 = scmp.ne.s32.totalorder %s160, %s163
      %p169 = scmp.eq.s32.totalorder %s13, 0
      %p170 = por %p168, %p169
      %p171 = scmp.ne.s32.totalorder %s160, %s163
      %p172 = scmp.eq.s32.totalorder %s18, 1
      %p173 = por %p171, %p172
      %p174 = scmp.ne.s32.totalorder %s163, %s164
      %p175 = scmp.eq.s32.totalorder %s18, 0
      %p176 = por %p174, %p175
      %p177 = scmp.ne.s32.totalorder %s163, %s164
      %p178 = scmp.eq.s32.totalorder %s19, 1
      %p179 = por %p177, %p178
      %p181 = scmp.ne.s32.totalorder %s164, %s180
      %p182 = scmp.eq.s32.totalorder %s19, 0
      %p183 = por %p181, %p182
      %p184 = scmp.le.s32.totalorder 1, %s13
      %p185 = scmp.lt.s32.totalorder %s13, 3
      %p186 = pnand %p184, %p185
      %p187 = pneg %p186
      // Predicated region
      $region9: #{tpu_custom_call.1} parent=5 // pred_check
        _
      $region10: #{tpu_custom_call.1} parent=5 // pred_check_branch
        %189 = sbr.rel (%p186) target = $region12
      $region11: #{tpu_custom_call.1} parent=5 // pred_region
        %s190 = ssub.s32 %s13, 1
      $region12: #{tpu_custom_call.1} parent=5 // pred_fallthru
        _
      %p191 = scmp.lt.s32.totalorder %s13, 2
      // Predicated region
      $region13: #{tpu_custom_call.1} parent=5 // pred_check
        %p192 = pneg %p191
      $region14: #{tpu_custom_call.1} parent=5 // pred_check_branch
        %194 = sbr.rel (%p192) target = $region16
      $region15: #{tpu_custom_call.1} parent=5 // pred_region
        // Predicated region
        $region17: #{tpu_custom_call.1} parent=15 // pred_check
          %p195 = pneg %p56
        $region18: #{tpu_custom_call.1} parent=15 // pred_check_branch
          %197 = sbr.rel (%p195) target = $region20
        $region19: #{tpu_custom_call.1} parent=15 // pred_region
          %s198 = smul.u32 32, %s21
          %s199 = smul.u32 2, %s22
          %p200 = scmp.lt.s32.totalorder %s20, 1
          %s201 = scalar_select %p200, %s20, 1
          %p202 = scmp.lt.s32.totalorder %s198, 31
          %s203 = scalar_select %p202, %s198, 31
          %p204 = scmp.lt.s32.totalorder %s199, 1
          %s205 = scalar_select %p204, %s199, 1
          %s206 = smul.addr %s203, 2
          %s207 = sadd.s32 %s205, %s206
          %s208 = smul.addr %s201, 64
          %s209 = sadd.s32 %s207, %s208
          %s210 = smul.addr %s209, 4
          %s211 = scalar_lea.vmem %s0, %s210
          %s212 = smul.u32 32, %s21
          %s213 = smul.u32 2, %s22
        $region20: #{tpu_custom_call.1} parent=15 // pred_fallthru
          _
        // Predicated region
        $region21: #{tpu_custom_call.1} parent=15 // pred_check
          %p214 = pneg %p86
        $region22: #{tpu_custom_call.1} parent=15 // pred_check_branch
          %216 = sbr.rel (%p214) target = $region24
        $region23: #{tpu_custom_call.1} parent=15 // pred_region
          %s217 = sand.u32 %s76, 1
          %s218 = scalar_lea.sflag [#allocation5], %s217
          %s219 = sand.u32 %s76, 1
          %s220 = smul.addr %s219, 256
          %s221 = scalar_lea.vmem [#allocation4], %s220
          %s222 = smul.u32 32, %s21
          %s223 = smul.u32 2, %s22
          %s225 = ssub.s32 4096, 4096
          %226 = vsyncadd %s218, %s225
          %s227 = smul.addr %s222, 2
          %s228 = sadd.s32 %s223, %s227
          %s229 = smul.addr %s20, 64
          %s230 = sadd.s32 %s228, %s229
          %s231 = smul.addr %s230, 64
          %s232 = scalar_lea.hbm %s1, %s231
          %s233 = sshll.u32 %s221, 4
          %s234 = int_to_ptr.vmem [resolvable:$true] %s233
          %239 = dma.hbm_to_vmem [thread:$0]  %s232, 4096, %s234, %s218, 128, 128, 8
        $region24: #{tpu_custom_call.1} parent=15 // pred_fallthru
          _
        // Predicated region
        $region25: #{tpu_custom_call.1} parent=15 // pred_check
          %p240 = pneg %p114
        $region26: #{tpu_custom_call.1} parent=15 // pred_check_branch
          %242 = sbr.rel (%p240) target = $region28
        $region27: #{tpu_custom_call.1} parent=15 // pred_region
          %s243 = smul.u32 32, %s22
          %p244 = scmp.lt.s32.totalorder %s20, 1
          %s245 = scalar_select %p244, %s20, 1
          %p246 = scmp.lt.s32.totalorder %s243, 31
          %s247 = scalar_select %p246, %s243, 31
          %s248 = smul.addr %s245, 32
          %s249 = sadd.s32 %s247, %s248
          %s250 = smul.addr %s249, 4
          %s251 = scalar_lea.vmem %s2, %s250
          %s252 = smul.u32 32, %s22
        $region28: #{tpu_custom_call.1} parent=15 // pred_fallthru
          _
        // Predicated region
        $region29: #{tpu_custom_call.1} parent=15 // pred_check
          %p253 = pneg %p142
        $region30: #{tpu_custom_call.1} parent=15 // pred_check_branch
          %255 = sbr.rel (%p253) target = $region32
        $region31: #{tpu_custom_call.1} parent=15 // pred_region
          %s256 = smul.u32 32, %s21
          %p257 = scmp.lt.s32.totalorder %s20, 1
          %s258 = scalar_select %p257, %s20, 1
          %p259 = scmp.lt.s32.totalorder %s256, 31
          %s260 = scalar_select %p259, %s256, 31
          %s261 = smul.addr %s258, 32
          %s262 = sadd.s32 %s260, %s261
          %s263 = smul.addr %s262, 4
          %s264 = scalar_lea.vmem %s3, %s263
          %s265 = smul.u32 32, %s21
        $region32: #{tpu_custom_call.1} parent=15 // pred_fallthru
          _
      $region16: #{tpu_custom_call.1} parent=5 // pred_fallthru
        _
      %p266 = scmp.le.s32.totalorder 1, %s13
      %p267 = scmp.lt.s32.totalorder %s13, 3
      %p268 = pnand %p266, %p267
      %p269 = pneg %p268
      // Predicated region
      $region33: #{tpu_custom_call.1} parent=5 // pred_check
        _
      $region34: #{tpu_custom_call.1} parent=5 // pred_check_branch
        %271 = sbr.rel (%p268) target = $region36
      $region35: #{tpu_custom_call.1} parent=5 // pred_region
        %s272 = ssub.s32 %s13, 1
        %s273 = sand.u32 %s79, 1
        %s274 = scalar_lea.sflag [#allocation5], %s273
        %s275 = sand.u32 %s79, 1
        %s276 = smul.addr %s275, 256
        %s277 = scalar_lea.vmem [#allocation4], %s276
        // Predicated region
        $region37: #{tpu_custom_call.1} parent=35 // pred_check
          %p278 = pneg %p92
        $region38: #{tpu_custom_call.1} parent=35 // pred_check_branch
          %280 = sbr.rel (%p278) target = $region40
        $region39: #{tpu_custom_call.1} parent=35 // pred_region
          %281 = dma.done %s274, 4096
        $region40: #{tpu_custom_call.1} parent=35 // pred_fallthru
          _
        %s282 = smul.u32 32, %s24
        %s283 = smul.u32 2, %s25
        %p284 = scmp.lt.s32.totalorder %s23, 1
        %s285 = scalar_select %p284, %s23, 1
        %p286 = scmp.lt.s32.totalorder %s282, 31
        %s287 = scalar_select %p286, %s282, 31
        %p288 = scmp.lt.s32.totalorder %s283, 1
        %s289 = scalar_select %p288, %s283, 1
        %s290 = smul.addr %s287, 2
        %s291 = sadd.s32 %s289, %s290
        %s292 = smul.addr %s285, 64
        %s293 = sadd.s32 %s291, %s292
        %s294 = smul.addr %s293, 4
        %s295 = scalar_lea.vmem %s0, %s294
        %p296 = pneg %p62
        %p297 = pneg %p59
        %s298 = sand.u32 %s79, 1
        %s299 = scalar_lea.sflag [#allocation5], %s298
        %s300 = sand.u32 %s79, 1
        %s301 = smul.addr %s300, 256
        %s302 = scalar_lea.vmem [#allocation4], %s301
        %p303 = pneg %p92
        %p304 = pneg %p89
        %s305 = smul.u32 32, %s25
        %p306 = scmp.lt.s32.totalorder %s23, 1
        %s307 = scalar_select %p306, %s23, 1
        %p308 = scmp.lt.s32.totalorder %s305, 31
        %s309 = scalar_select %p308, %s305, 31
        %s310 = smul.addr %s307, 32
        %s311 = sadd.s32 %s309, %s310
        %s312 = smul.addr %s311, 4
        %s313 = scalar_lea.vmem %s2, %s312
        %p314 = pneg %p120
        %p315 = pneg %p117
        %s316 = smul.u32 32, %s24
        %p317 = scmp.lt.s32.totalorder %s23, 1
        %s318 = scalar_select %p317, %s23, 1
        %p319 = scmp.lt.s32.totalorder %s316, 31
        %s320 = scalar_select %p319, %s316, 31
        %s321 = smul.addr %s318, 32
        %s322 = sadd.s32 %s320, %s321
        %s323 = smul.addr %s322, 4
        %s324 = scalar_lea.vmem %s3, %s323
        %p325 = pneg %p148
        %p326 = pneg %p145
        %p327 = pneg %p176
        %p328 = pneg %p173
        %s329 = smul.u32 32, %s24
        %p330 = scmp.lt.s32.totalorder %s23, 1
        %s331 = scalar_select %p330, %s23, 1
        %p332 = scmp.lt.s32.totalorder %s329, 31
        %s333 = scalar_select %p332, %s329, 31
        %s334 = smul.addr %s331, 96
        %s335 = sadd.s32 %s333, %s334
        %s336 = smul.addr %s335, 4
        %s337 = scalar_lea.vmem %s4, %s336
        %s338 = smul.u32 32, %s24
        %s339 = smul.u32 2, %s25
        %p340 = scmp.lt.s32.totalorder %s23, 1
        %s341 = scalar_select %p340, %s23, 1
        %p342 = scmp.lt.s32.totalorder %s338, 31
        %s343 = scalar_select %p342, %s338, 31
        %p344 = scmp.lt.s32.totalorder %s339, 1
        %s345 = scalar_select %p344, %s339, 1
        %s346 = smul.addr %s343, 2
        %s347 = sadd.s32 %s345, %s346
        %s348 = smul.addr %s341, 64
        %s349 = sadd.s32 %s347, %s348
        %s350 = smul.addr %s349, 4
        %s351 = scalar_lea.vmem %s0, %s350
        %s352 = smul.u32 32, %s24
        %s353 = smul.u32 2, %s25
        %s354 = smul.u32 32, %s24
        %s355 = smul.u32 2, %s25
        %s356 = smul.u32 32, %s25
        %p357 = scmp.lt.s32.totalorder %s23, 1
        %s358 = scalar_select %p357, %s23, 1
        %p359 = scmp.lt.s32.totalorder %s356, 31
        %s360 = scalar_select %p359, %s356, 31
        %s361 = smul.addr %s358, 32
        %s362 = sadd.s32 %s360, %s361
        %s363 = smul.addr %s362, 4
        %s364 = scalar_lea.vmem %s2, %s363
        %s365 = smul.u32 32, %s25
        %s366 = smul.u32 32, %s24
        %p367 = scmp.lt.s32.totalorder %s23, 1
        %s368 = scalar_select %p367, %s23, 1
        %p369 = scmp.lt.s32.totalorder %s366, 31
        %s370 = scalar_select %p369, %s366, 31
        %s371 = smul.addr %s368, 32
        %s372 = sadd.s32 %s370, %s371
        %s373 = smul.addr %s372, 4
        %s374 = scalar_lea.vmem %s3, %s373
        %s375 = smul.u32 32, %s24
        %s376 = smul.u32 32, %s24
        %p377 = scmp.lt.s32.totalorder %s23, 1
        %s378 = scalar_select %p377, %s23, 1
        %p379 = scmp.lt.s32.totalorder %s376, 31
        %s380 = scalar_select %p379, %s376, 31
        %s381 = smul.addr %s378, 96
        %s382 = sadd.s32 %s380, %s381
        %s383 = smul.addr %s382, 4
        %s384 = scalar_lea.vmem %s4, %s383
        %s385 = smul.u32 32, %s24
        %p387 = scmp.eq.s32.totalorder %s25, 0
        // Predicated region
        $region41: #{tpu_custom_call.1} parent=35 // pred_check
          %p388 = pneg %p387
        $region42: #{tpu_custom_call.1} parent=35 // pred_check_branch
          %390 = sbr.rel (%p388) target = $region44
        $region43: #{tpu_custom_call.1} parent=35 // pred_region
          %vm391 = vcmask 130048
          %392 = vst.msk [vmem:[#allocation2] sm:$0xff] %vm391, 0.0
          %393 = vst.msk [vmem:[#allocation2 + $0x8] sm:$0xff] %vm391, 0.0
          %394 = vst.msk [vmem:[#allocation2 + $0x10] sm:$0xff] %vm391, 0.0
          %395 = vst.msk [vmem:[#allocation2 + $0x18] sm:$0xff] %vm391, 0.0
          %396 = vst.msk [vmem:[#allocation2 + $0x20] sm:$0xff] %vm391, 0.0
          %397 = vst.msk [vmem:[#allocation2 + $0x28] sm:$0xff] %vm391, 0.0
          %398 = vst.msk [vmem:[#allocation2 + $0x30] sm:$0xff] %vm391, 0.0
          %399 = vst.msk [vmem:[#allocation2 + $0x38] sm:$0xff] %vm391, 0.0
          %400 = vst.msk [vmem:[#allocation2 + $0x40] sm:$0xff] %vm391, 0.0
          %401 = vst.msk [vmem:[#allocation2 + $0x48] sm:$0xff] %vm391, 0.0
          %402 = vst.msk [vmem:[#allocation2 + $0x50] sm:$0xff] %vm391, 0.0
          %403 = vst.msk [vmem:[#allocation2 + $0x58] sm:$0xff] %vm391, 0.0
          %404 = vst.msk [vmem:[#allocation2 + $0x60] sm:$0xff] %vm391, 0.0
          %405 = vst.msk [vmem:[#allocation2 + $0x68] sm:$0xff] %vm391, 0.0
          %406 = vst.msk [vmem:[#allocation2 + $0x70] sm:$0xff] %vm391, 0.0
          %407 = vst.msk [vmem:[#allocation2 + $0x78] sm:$0xff] %vm391, 0.0
          %408 = vst.msk [vmem:[#allocation2 + $0x80] sm:$0xff] %vm391, 0.0
          %409 = vst.msk [vmem:[#allocation2 + $0x88] sm:$0xff] %vm391, 0.0
          %410 = vst.msk [vmem:[#allocation2 + $0x90] sm:$0xff] %vm391, 0.0
          %411 = vst.msk [vmem:[#allocation2 + $0x98] sm:$0xff] %vm391, 0.0
          %412 = vst.msk [vmem:[#allocation2 + $0xa0] sm:$0xff] %vm391, 0.0
          %413 = vst.msk [vmem:[#allocation2 + $0xa8] sm:$0xff] %vm391, 0.0
          %414 = vst.msk [vmem:[#allocation2 + $0xb0] sm:$0xff] %vm391, 0.0
          %415 = vst.msk [vmem:[#allocation2 + $0xb8] sm:$0xff] %vm391, 0.0
          %416 = vst.msk [vmem:[#allocation2 + $0xc0] sm:$0xff] %vm391, 0.0
          %417 = vst.msk [vmem:[#allocation2 + $0xc8] sm:$0xff] %vm391, 0.0
          %418 = vst.msk [vmem:[#allocation2 + $0xd0] sm:$0xff] %vm391, 0.0
          %419 = vst.msk [vmem:[#allocation2 + $0xd8] sm:$0xff] %vm391, 0.0
          %420 = vst.msk [vmem:[#allocation2 + $0xe0] sm:$0xff] %vm391, 0.0
          %421 = vst.msk [vmem:[#allocation2 + $0xe8] sm:$0xff] %vm391, 0.0
          %422 = vst.msk [vmem:[#allocation2 + $0xf0] sm:$0xff] %vm391, 0.0
          %423 = vst.msk [vmem:[#allocation2 + $0xf8] sm:$0xff] %vm391, 0.0
          %424 = vst.msk [vmem:[#allocation3] sm:$0xff] %vm391, 0.0
          %425 = vst.msk [vmem:[#allocation3 + $0x8] sm:$0xff] %vm391, 0.0
          %426 = vst.msk [vmem:[#allocation3 + $0x10] sm:$0xff] %vm391, 0.0
          %427 = vst.msk [vmem:[#allocation3 + $0x18] sm:$0xff] %vm391, 0.0
          %428 = vst.msk [vmem:[#allocation3 + $0x20] sm:$0xff] %vm391, 0.0
          %429 = vst.msk [vmem:[#allocation3 + $0x28] sm:$0xff] %vm391, 0.0
          %430 = vst.msk [vmem:[#allocation3 + $0x30] sm:$0xff] %vm391, 0.0
          %431 = vst.msk [vmem:[#allocation3 + $0x38] sm:$0xff] %vm391, 0.0
          %432 = vst.msk [vmem:[#allocation3 + $0x40] sm:$0xff] %vm391, 0.0
          %433 = vst.msk [vmem:[#allocation3 + $0x48] sm:$0xff] %vm391, 0.0
          %434 = vst.msk [vmem:[#allocation3 + $0x50] sm:$0xff] %vm391, 0.0
          %435 = vst.msk [vmem:[#allocation3 + $0x58] sm:$0xff] %vm391, 0.0
          %436 = vst.msk [vmem:[#allocation3 + $0x60] sm:$0xff] %vm391, 0.0
          %437 = vst.msk [vmem:[#allocation3 + $0x68] sm:$0xff] %vm391, 0.0
          %438 = vst.msk [vmem:[#allocation3 + $0x70] sm:$0xff] %vm391, 0.0
          %439 = vst.msk [vmem:[#allocation3 + $0x78] sm:$0xff] %vm391, 0.0
          %440 = vst.msk [vmem:[#allocation3 + $0x80] sm:$0xff] %vm391, 0.0
          %441 = vst.msk [vmem:[#allocation3 + $0x88] sm:$0xff] %vm391, 0.0
          %442 = vst.msk [vmem:[#allocation3 + $0x90] sm:$0xff] %vm391, 0.0
          %443 = vst.msk [vmem:[#allocation3 + $0x98] sm:$0xff] %vm391, 0.0
          %444 = vst.msk [vmem:[#allocation3 + $0xa0] sm:$0xff] %vm391, 0.0
          %445 = vst.msk [vmem:[#allocation3 + $0xa8] sm:$0xff] %vm391, 0.0
          %446 = vst.msk [vmem:[#allocation3 + $0xb0] sm:$0xff] %vm391, 0.0
          %447 = vst.msk [vmem:[#allocation3 + $0xb8] sm:$0xff] %vm391, 0.0
          %448 = vst.msk [vmem:[#allocation3 + $0xc0] sm:$0xff] %vm391, 0.0
          %449 = vst.msk [vmem:[#allocation3 + $0xc8] sm:$0xff] %vm391, 0.0
          %450 = vst.msk [vmem:[#allocation3 + $0xd0] sm:$0xff] %vm391, 0.0
          %451 = vst.msk [vmem:[#allocation3 + $0xd8] sm:$0xff] %vm391, 0.0
          %452 = vst.msk [vmem:[#allocation3 + $0xe0] sm:$0xff] %vm391, 0.0
          %453 = vst.msk [vmem:[#allocation3 + $0xe8] sm:$0xff] %vm391, 0.0
          %454 = vst.msk [vmem:[#allocation3 + $0xf0] sm:$0xff] %vm391, 0.0
          %455 = vst.msk [vmem:[#allocation3 + $0xf8] sm:$0xff] %vm391, 0.0
        $region44: #{tpu_custom_call.1} parent=35 // pred_fallthru
          _
        %v456 = vld [vmem:[%s364] sm:$0xf]
        %v457 = vld [vmem:[%s364 + $0x4] sm:$0xf]
        %v458 = vld [vmem:[%s364 + $0x8] sm:$0xf]
        %v459 = vld [vmem:[%s364 + $0xc] sm:$0xf]
        %v460 = vld [vmem:[%s364 + $0x10] sm:$0xf]
        %v461 = vld [vmem:[%s364 + $0x14] sm:$0xf]
        %v462 = vld [vmem:[%s364 + $0x18] sm:$0xf]
        %v463 = vld [vmem:[%s364 + $0x1c] sm:$0xf]
        %v464 = vld [vmem:[%s364 + $0x20] sm:$0xf]
        %v465 = vld [vmem:[%s364 + $0x24] sm:$0xf]
        %v466 = vld [vmem:[%s364 + $0x28] sm:$0xf]
        %v467 = vld [vmem:[%s364 + $0x2c] sm:$0xf]
        %v468 = vld [vmem:[%s364 + $0x30] sm:$0xf]
        %v469 = vld [vmem:[%s364 + $0x34] sm:$0xf]
        %v470 = vld [vmem:[%s364 + $0x38] sm:$0xf]
        %v471 = vld [vmem:[%s364 + $0x3c] sm:$0xf]
        %v472 = vld [vmem:[%s364 + $0x40] sm:$0xf]
        %v473 = vld [vmem:[%s364 + $0x44] sm:$0xf]
        %v474 = vld [vmem:[%s364 + $0x48] sm:$0xf]
        %v475 = vld [vmem:[%s364 + $0x4c] sm:$0xf]
        %v476 = vld [vmem:[%s364 + $0x50] sm:$0xf]
        %v477 = vld [vmem:[%s364 + $0x54] sm:$0xf]
        %v478 = vld [vmem:[%s364 + $0x58] sm:$0xf]
        %v479 = vld [vmem:[%s364 + $0x5c] sm:$0xf]
        %v480 = vld [vmem:[%s364 + $0x60] sm:$0xf]
        %v481 = vld [vmem:[%s364 + $0x64] sm:$0xf]
        %v482 = vld [vmem:[%s364 + $0x68] sm:$0xf]
        %v483 = vld [vmem:[%s364 + $0x6c] sm:$0xf]
        %v484 = vld [vmem:[%s364 + $0x70] sm:$0xf]
        %v485 = vld [vmem:[%s364 + $0x74] sm:$0xf]
        %v486 = vld [vmem:[%s364 + $0x78] sm:$0xf]
        %v487 = vld [vmem:[%s364 + $0x7c] sm:$0xf]
        %v488 = vld [vmem:[#allocation2] sm:$0xff]
        %v489 = vld [vmem:[#allocation2 + $0x8] sm:$0xff]
        %v490 = vld [vmem:[#allocation2 + $0x10] sm:$0xff]
        %v491 = vld [vmem:[#allocation2 + $0x18] sm:$0xff]
        %v492 = vld [vmem:[#allocation2 + $0x20] sm:$0xff]
        %v493 = vld [vmem:[#allocation2 + $0x28] sm:$0xff]
        %v494 = vld [vmem:[#allocation2 + $0x30] sm:$0xff]
        %v495 = vld [vmem:[#allocation2 + $0x38] sm:$0xff]
        %v496 = vld [vmem:[#allocation2 + $0x40] sm:$0xff]
        %v497 = vld [vmem:[#allocation2 + $0x48] sm:$0xff]
        %v498 = vld [vmem:[#allocation2 + $0x50] sm:$0xff]
        %v499 = vld [vmem:[#allocation2 + $0x58] sm:$0xff]
        %v500 = vld [vmem:[#allocation2 + $0x60] sm:$0xff]
        %v501 = vld [vmem:[#allocation2 + $0x68] sm:$0xff]
        %v502 = vld [vmem:[#allocation2 + $0x70] sm:$0xff]
        %v503 = vld [vmem:[#allocation2 + $0x78] sm:$0xff]
        %v504 = vld [vmem:[#allocation2 + $0x80] sm:$0xff]
        %v505 = vld [vmem:[#allocation2 + $0x88] sm:$0xff]
        %v506 = vld [vmem:[#allocation2 + $0x90] sm:$0xff]
        %v507 = vld [vmem:[#allocation2 + $0x98] sm:$0xff]
        %v508 = vld [vmem:[#allocation2 + $0xa0] sm:$0xff]
        %v509 = vld [vmem:[#allocation2 + $0xa8] sm:$0xff]
        %v510 = vld [vmem:[#allocation2 + $0xb0] sm:$0xff]
        %v511 = vld [vmem:[#allocation2 + $0xb8] sm:$0xff]
        %v512 = vld [vmem:[#allocation2 + $0xc0] sm:$0xff]
        %v513 = vld [vmem:[#allocation2 + $0xc8] sm:$0xff]
        %v514 = vld [vmem:[#allocation2 + $0xd0] sm:$0xff]
        %v515 = vld [vmem:[#allocation2 + $0xd8] sm:$0xff]
        %v516 = vld [vmem:[#allocation2 + $0xe0] sm:$0xff]
        %v517 = vld [vmem:[#allocation2 + $0xe8] sm:$0xff]
        %v518 = vld [vmem:[#allocation2 + $0xf0] sm:$0xff]
        %v519 = vld [vmem:[#allocation2 + $0xf8] sm:$0xff]
        %v520 = vld [vmem:[%s351] sm:$0xff]
        %v521 = vld [vmem:[%s351 + $0x8] sm:$0xff]
        %v522 = vld [vmem:[%s351 + $0x10] sm:$0xff]
        %v523 = vld [vmem:[%s351 + $0x18] sm:$0xff]
        %v524 = vld [vmem:[%s351 + $0x20] sm:$0xff]
        %v525 = vld [vmem:[%s351 + $0x28] sm:$0xff]
        %v526 = vld [vmem:[%s351 + $0x30] sm:$0xff]
        %v527 = vld [vmem:[%s351 + $0x38] sm:$0xff]
        %v528 = vld [vmem:[%s351 + $0x40] sm:$0xff]
        %v529 = vld [vmem:[%s351 + $0x48] sm:$0xff]
        %v530 = vld [vmem:[%s351 + $0x50] sm:$0xff]
        %v531 = vld [vmem:[%s351 + $0x58] sm:$0xff]
        %v532 = vld [vmem:[%s351 + $0x60] sm:$0xff]
        %v533 = vld [vmem:[%s351 + $0x68] sm:$0xff]
        %v534 = vld [vmem:[%s351 + $0x70] sm:$0xff]
        %v535 = vld [vmem:[%s351 + $0x78] sm:$0xff]
        %v536 = vld [vmem:[%s351 + $0x80] sm:$0xff]
        %v537 = vld [vmem:[%s351 + $0x88] sm:$0xff]
        %v538 = vld [vmem:[%s351 + $0x90] sm:$0xff]
        %v539 = vld [vmem:[%s351 + $0x98] sm:$0xff]
        %v540 = vld [vmem:[%s351 + $0xa0] sm:$0xff]
        %v541 = vld [vmem:[%s351 + $0xa8] sm:$0xff]
        %v542 = vld [vmem:[%s351 + $0xb0] sm:$0xff]
        %v543 = vld [vmem:[%s351 + $0xb8] sm:$0xff]
        %v544 = vld [vmem:[%s351 + $0xc0] sm:$0xff]
        %v545 = vld [vmem:[%s351 + $0xc8] sm:$0xff]
        %v546 = vld [vmem:[%s351 + $0xd0] sm:$0xff]
        %v547 = vld [vmem:[%s351 + $0xd8] sm:$0xff]
        %v548 = vld [vmem:[%s351 + $0xe0] sm:$0xff]
        %v549 = vld [vmem:[%s351 + $0xe8] sm:$0xff]
        %v550 = vld [vmem:[%s351 + $0xf0] sm:$0xff]
        %v551 = vld [vmem:[%s351 + $0xf8] sm:$0xff]
        %v584 = vunpack.c.l.b16 %v520
        %v585 = vunpack.c.h.b16 %v520
        %v586 = vunpack.c.l.b16 %v521
        %v587 = vunpack.c.h.b16 %v521
        %v588 = vunpack.c.l.b16 %v522
        %v589 = vunpack.c.h.b16 %v522
        %v590 = vunpack.c.l.b16 %v523
        %v591 = vunpack.c.h.b16 %v523
        %v592 = vunpack.c.l.b16 %v524
        %v593 = vunpack.c.h.b16 %v524
        %v594 = vunpack.c.l.b16 %v525
        %v595 = vunpack.c.h.b16 %v525
        %v596 = vunpack.c.l.b16 %v526
        %v597 = vunpack.c.h.b16 %v526
        %v598 = vunpack.c.l.b16 %v527
        %v599 = vunpack.c.h.b16 %v527
        %v600 = vunpack.c.l.b16 %v528
        %v601 = vunpack.c.h.b16 %v528
        %v602 = vunpack.c.l.b16 %v529
        %v603 = vunpack.c.h.b16 %v529
        %v604 = vunpack.c.l.b16 %v530
        %v605 = vunpack.c.h.b16 %v530
        %v606 = vunpack.c.l.b16 %v531
        %v607 = vunpack.c.h.b16 %v531
        %v608 = vunpack.c.l.b16 %v532
        %v609 = vunpack.c.h.b16 %v532
        %v610 = vunpack.c.l.b16 %v533
        %v611 = vunpack.c.h.b16 %v533
        %v612 = vunpack.c.l.b16 %v534
        %v613 = vunpack.c.h.b16 %v534
        %v614 = vunpack.c.l.b16 %v535
        %v615 = vunpack.c.h.b16 %v535
        %v616 = vunpack.c.l.b16 %v536
        %v617 = vunpack.c.h.b16 %v536
        %v618 = vunpack.c.l.b16 %v537
        %v619 = vunpack.c.h.b16 %v537
        %v620 = vunpack.c.l.b16 %v538
        %v621 = vunpack.c.h.b16 %v538
        %v622 = vunpack.c.l.b16 %v539
        %v623 = vunpack.c.h.b16 %v539
        %v624 = vunpack.c.l.b16 %v540
        %v625 = vunpack.c.h.b16 %v540
        %v626 = vunpack.c.l.b16 %v541
        %v627 = vunpack.c.h.b16 %v541
        %v628 = vunpack.c.l.b16 %v542
        %v629 = vunpack.c.h.b16 %v542
        %v630 = vunpack.c.l.b16 %v543
        %v631 = vunpack.c.h.b16 %v543
        %v632 = vunpack.c.l.b16 %v544
        %v633 = vunpack.c.h.b16 %v544
        %v634 = vunpack.c.l.b16 %v545
        %v635 = vunpack.c.h.b16 %v545
        %v636 = vunpack.c.l.b16 %v546
        %v637 = vunpack.c.h.b16 %v546
        %v638 = vunpack.c.l.b16 %v547
        %v639 = vunpack.c.h.b16 %v547
        %v640 = vunpack.c.l.b16 %v548
        %v641 = vunpack.c.h.b16 %v548
        %v642 = vunpack.c.l.b16 %v549
        %v643 = vunpack.c.h.b16 %v549
        %v644 = vunpack.c.l.b16 %v550
        %v645 = vunpack.c.h.b16 %v550
        %v646 = vunpack.c.l.b16 %v551
        %v647 = vunpack.c.h.b16 %v551
        %v648 = vpack.c.b16 %v586, %v584
        %v649 = vpack.c.b16 %v587, %v585
        %v650 = vpack.c.b16 %v590, %v588
        %v651 = vpack.c.b16 %v591, %v589
        %v652 = vpack.c.b16 %v594, %v592
        %v653 = vpack.c.b16 %v595, %v593
        %v654 = vpack.c.b16 %v598, %v596
        %v655 = vpack.c.b16 %v599, %v597
        %v656 = vpack.c.b16 %v602, %v600
        %v657 = vpack.c.b16 %v603, %v601
        %v658 = vpack.c.b16 %v606, %v604
        %v659 = vpack.c.b16 %v607, %v605
        %v660 = vpack.c.b16 %v610, %v608
        %v661 = vpack.c.b16 %v611, %v609
        %v662 = vpack.c.b16 %v614, %v612
        %v663 = vpack.c.b16 %v615, %v613
        %v664 = vpack.c.b16 %v618, %v616
        %v665 = vpack.c.b16 %v619, %v617
        %v666 = vpack.c.b16 %v622, %v620
        %v667 = vpack.c.b16 %v623, %v621
        %v668 = vpack.c.b16 %v626, %v624
        %v669 = vpack.c.b16 %v627, %v625
        %v670 = vpack.c.b16 %v630, %v628
        %v671 = vpack.c.b16 %v631, %v629
        %v672 = vpack.c.b16 %v634, %v632
        %v673 = vpack.c.b16 %v635, %v633
        %v674 = vpack.c.b16 %v638, %v636
        %v675 = vpack.c.b16 %v639, %v637
        %v676 = vpack.c.b16 %v642, %v640
        %v677 = vpack.c.b16 %v643, %v641
        %v678 = vpack.c.b16 %v646, %v644
        %v679 = vpack.c.b16 %v647, %v645
        %v744 = vunpack.c.l.b16 %v456
        %v745 = vunpack.c.l.b16 %v457
        %v746 = vunpack.c.l.b16 %v458
        %v747 = vunpack.c.l.b16 %v459
        %v748 = vunpack.c.l.b16 %v460
        %v749 = vunpack.c.l.b16 %v461
        %v750 = vunpack.c.l.b16 %v462
        %v751 = vunpack.c.l.b16 %v463
        %v752 = vunpack.c.l.b16 %v464
        %v753 = vunpack.c.l.b16 %v465
        %v754 = vunpack.c.l.b16 %v466
        %v755 = vunpack.c.l.b16 %v467
        %v756 = vunpack.c.l.b16 %v468
        %v757 = vunpack.c.l.b16 %v469
        %v758 = vunpack.c.l.b16 %v470
        %v759 = vunpack.c.l.b16 %v471
        %v760 = vunpack.c.l.b16 %v472
        %v761 = vunpack.c.l.b16 %v473
        %v762 = vunpack.c.l.b16 %v474
        %v763 = vunpack.c.l.b16 %v475
        %v764 = vunpack.c.l.b16 %v476
        %v765 = vunpack.c.l.b16 %v477
        %v766 = vunpack.c.l.b16 %v478
        %v767 = vunpack.c.l.b16 %v479
        %v768 = vunpack.c.l.b16 %v480
        %v769 = vunpack.c.l.b16 %v481
        %v770 = vunpack.c.l.b16 %v482
        %v771 = vunpack.c.l.b16 %v483
        %v772 = vunpack.c.l.b16 %v484
        %v773 = vunpack.c.l.b16 %v485
        %v774 = vunpack.c.l.b16 %v486
        %v775 = vunpack.c.l.b16 %v487
        %v776 = vpack.c.b16 %v745, %v744
        %v777 = vpack.c.b16 %v747, %v746
        %v778 = vpack.c.b16 %v749, %v748
        %v779 = vpack.c.b16 %v751, %v750
        %v780 = vpack.c.b16 %v753, %v752
        %v781 = vpack.c.b16 %v755, %v754
        %v782 = vpack.c.b16 %v757, %v756
        %v783 = vpack.c.b16 %v759, %v758
        %v784 = vpack.c.b16 %v761, %v760
        %v785 = vpack.c.b16 %v763, %v762
        %v786 = vpack.c.b16 %v765, %v764
        %v787 = vpack.c.b16 %v767, %v766
        %v788 = vpack.c.b16 %v769, %v768
        %v789 = vpack.c.b16 %v771, %v770
        %v790 = vpack.c.b16 %v773, %v772
        %v791 = vpack.c.b16 %v775, %v774
        %808 = vmatprep.subr.bf16.mxu0 0
        %809 = vmatpush1.bf16.msra.mxu0 %v783
        %810 = vmatprep.subr.bf16.mxu0 0
        %811 = vmatpush1.bf16.msra.mxu0 %v782
        %812 = vmatprep.subr.bf16.mxu0 0
        %813 = vmatpush1.bf16.msra.mxu0 %v781
        %814 = vmatprep.subr.bf16.mxu0 0
        %815 = vmatpush1.bf16.msra.mxu0 %v780
        %816 = vmatprep.subr.bf16.mxu0 0
        %817 = vmatpush1.bf16.msra.mxu0 %v779
        %818 = vmatprep.subr.bf16.mxu0 0
        %819 = vmatpush1.bf16.msra.mxu0 %v778
        %820 = vmatprep.subr.bf16.mxu0 0
        %821 = vmatpush1.bf16.msra.mxu0 %v777
        %822 = vmatprep.subr.bf16.mxu0 0
        %823 = vmatpush1.bf16.msra.mxu0 %v776
        %824 = vmatprep.subr.bf16.mxu0 0
        %825 = vmatpush2.bf16.msra.mxu0 %v791
        %826 = vmatprep.subr.bf16.mxu0 0
        %827 = vmatpush2.bf16.msra.mxu0 %v790
        %828 = vmatprep.subr.bf16.mxu0 0
        %829 = vmatpush2.bf16.msra.mxu0 %v789
        %830 = vmatprep.subr.bf16.mxu0 0
        %831 = vmatpush2.bf16.msra.mxu0 %v788
        %832 = vmatprep.subr.bf16.mxu0 0
        %833 = vmatpush2.bf16.msra.mxu0 %v787
        %834 = vmatprep.subr.bf16.mxu0 0
        %835 = vmatpush2.bf16.msra.mxu0 %v786
        %836 = vmatprep.subr.bf16.mxu0 0
        %837 = vmatpush2.bf16.msra.mxu0 %v785
        %838 = vmatprep.subr.bf16.mxu0 0
        %839 = vmatpush2.bf16.msra.mxu0 %v784
        %840 = vmatprep.mubr.bf16.mxu0 %v649
        %841 = vmatmul.mubr.bf16.gmra.mxu0 %v648
        %v842 = vpop.f32.mrf.mxu0
        %v843 = vadd.f32 0.0, %v842
        %v844 = vpop.f32.mrf.mxu0
        %v845 = vpop.f32.mrf.mxu0
        %v846 = vadd.f32 0.0, %v845
        %v847 = vpop.f32.mrf.mxu0
        %848 = vmatprep.mubr.bf16.mxu0 %v651
        %849 = vmatmul.mubr.bf16.gmra.mxu0 %v650
        %v850 = vpop.f32.mrf.mxu0
        %v851 = vadd.f32 0.0, %v850
        %v852 = vpop.f32.mrf.mxu0
        %v853 = vpop.f32.mrf.mxu0
        %v854 = vadd.f32 0.0, %v853
        %v855 = vpop.f32.mrf.mxu0
        %856 = vmatprep.mubr.bf16.mxu0 %v653
        %857 = vmatmul.mubr.bf16.gmra.mxu0 %v652
        %v858 = vpop.f32.mrf.mxu0
        %v859 = vadd.f32 0.0, %v858
        %v860 = vpop.f32.mrf.mxu0
        %v861 = vpop.f32.mrf.mxu0
        %v862 = vadd.f32 0.0, %v861
        %v863 = vpop.f32.mrf.mxu0
        %864 = vmatprep.mubr.bf16.mxu0 %v655
        %865 = vmatmul.mubr.bf16.gmra.mxu0 %v654
        %v866 = vpop.f32.mrf.mxu0
        %v867 = vadd.f32 0.0, %v866
        %v868 = vpop.f32.mrf.mxu0
        %v869 = vpop.f32.mrf.mxu0
        %v870 = vadd.f32 0.0, %v869
        %v871 = vpop.f32.mrf.mxu0
        %872 = vmatprep.mubr.bf16.mxu0 %v657
        %873 = vmatmul.mubr.bf16.gmra.mxu0 %v656
        %v874 = vpop.f32.mrf.mxu0
        %v875 = vadd.f32 0.0, %v874
        %v876 = vpop.f32.mrf.mxu0
        %v877 = vpop.f32.mrf.mxu0
        %v878 = vadd.f32 0.0, %v877
        %v879 = vpop.f32.mrf.mxu0
        %880 = vmatprep.mubr.bf16.mxu0 %v659
        %881 = vmatmul.mubr.bf16.gmra.mxu0 %v658
        %v882 = vpop.f32.mrf.mxu0
        %v883 = vadd.f32 0.0, %v882
        %v884 = vpop.f32.mrf.mxu0
        %v885 = vpop.f32.mrf.mxu0
        %v886 = vadd.f32 0.0, %v885
        %v887 = vpop.f32.mrf.mxu0
        %888 = vmatprep.mubr.bf16.mxu0 %v661
        %889 = vmatmul.mubr.bf16.gmra.mxu0 %v660
        %v890 = vpop.f32.mrf.mxu0
        %v891 = vadd.f32 0.0, %v890
        %v892 = vpop.f32.mrf.mxu0
        %v893 = vpop.f32.mrf.mxu0
        %v894 = vadd.f32 0.0, %v893
        %v895 = vpop.f32.mrf.mxu0
        %896 = vmatprep.mubr.bf16.mxu0 %v663
        %897 = vmatmul.mubr.bf16.gmra.mxu0 %v662
        %v898 = vpop.f32.mrf.mxu0
        %v899 = vadd.f32 0.0, %v898
        %v900 = vpop.f32.mrf.mxu0
        %v901 = vpop.f32.mrf.mxu0
        %v902 = vadd.f32 0.0, %v901
        %v903 = vpop.f32.mrf.mxu0
        %904 = vmatprep.mubr.bf16.mxu0 %v665
        %905 = vmatmul.mubr.bf16.gmra.mxu0 %v664
        %v906 = vpop.f32.mrf.mxu0
        %v907 = vadd.f32 0.0, %v906
        %v908 = vpop.f32.mrf.mxu0
        %v909 = vpop.f32.mrf.mxu0
        %v910 = vadd.f32 0.0, %v909
        %v911 = vpop.f32.mrf.mxu0
        %912 = vmatprep.mubr.bf16.mxu0 %v667
        %913 = vmatmul.mubr.bf16.gmra.mxu0 %v666
        %v914 = vpop.f32.mrf.mxu0
        %v915 = vadd.f32 0.0, %v914
        %v916 = vpop.f32.mrf.mxu0
        %v917 = vpop.f32.mrf.mxu0
        %v918 = vadd.f32 0.0, %v917
        %v919 = vpop.f32.mrf.mxu0
        %920 = vmatprep.mubr.bf16.mxu0 %v669
        %921 = vmatmul.mubr.bf16.gmra.mxu0 %v668
        %v922 = vpop.f32.mrf.mxu0
        %v923 = vadd.f32 0.0, %v922
        %v924 = vpop.f32.mrf.mxu0
        %v925 = vpop.f32.mrf.mxu0
        %v926 = vadd.f32 0.0, %v925
        %v927 = vpop.f32.mrf.mxu0
        %928 = vmatprep.mubr.bf16.mxu0 %v671
        %929 = vmatmul.mubr.bf16.gmra.mxu0 %v670
        %v930 = vpop.f32.mrf.mxu0
        %v931 = vadd.f32 0.0, %v930
        %v932 = vpop.f32.mrf.mxu0
        %v933 = vpop.f32.mrf.mxu0
        %v934 = vadd.f32 0.0, %v933
        %v935 = vpop.f32.mrf.mxu0
        %936 = vmatprep.mubr.bf16.mxu0 %v673
        %937 = vmatmul.mubr.bf16.gmra.mxu0 %v672
        %v938 = vpop.f32.mrf.mxu0
        %v939 = vadd.f32 0.0, %v938
        %v940 = vpop.f32.mrf.mxu0
        %v941 = vpop.f32.mrf.mxu0
        %v942 = vadd.f32 0.0, %v941
        %v943 = vpop.f32.mrf.mxu0
        %944 = vmatprep.mubr.bf16.mxu0 %v675
        %945 = vmatmul.mubr.bf16.gmra.mxu0 %v674
        %v946 = vpop.f32.mrf.mxu0
        %v947 = vadd.f32 0.0, %v946
        %v948 = vpop.f32.mrf.mxu0
        %v949 = vpop.f32.mrf.mxu0
        %v950 = vadd.f32 0.0, %v949
        %v951 = vpop.f32.mrf.mxu0
        %952 = vmatprep.mubr.bf16.mxu0 %v677
        %953 = vmatmul.mubr.bf16.gmra.mxu0 %v676
        %v954 = vpop.f32.mrf.mxu0
        %v955 = vadd.f32 0.0, %v954
        %v956 = vpop.f32.mrf.mxu0
        %v957 = vpop.f32.mrf.mxu0
        %v958 = vadd.f32 0.0, %v957
        %v959 = vpop.f32.mrf.mxu0
        %960 = vmatprep.mubr.bf16.mxu0 %v679
        %961 = vmatmul.mubr.bf16.gmra.mxu0 %v678
        %v962 = vpop.f32.mrf.mxu0
        %v963 = vadd.f32 0.0, %v962
        %v964 = vpop.f32.mrf.mxu0
        %v965 = vpop.f32.mrf.mxu0
        %v966 = vadd.f32 0.0, %v965
        %v967 = vpop.f32.mrf.mxu0
        %968 = vdwg.mxu0
        %v969 = vadd.f32 %v488, %v843
        %v970 = vadd.f32 %v489, %v846
        %v971 = vadd.f32 %v490, %v851
        %v972 = vadd.f32 %v491, %v854
        %v973 = vadd.f32 %v492, %v859
        %v974 = vadd.f32 %v493, %v862
        %v975 = vadd.f32 %v494, %v867
        %v976 = vadd.f32 %v495, %v870
        %v977 = vadd.f32 %v496, %v875
        %v978 = vadd.f32 %v497, %v878
        %v979 = vadd.f32 %v498, %v883
        %v980 = vadd.f32 %v499, %v886
        %v981 = vadd.f32 %v500, %v891
        %v982 = vadd.f32 %v501, %v894
        %v983 = vadd.f32 %v502, %v899
        %v984 = vadd.f32 %v503, %v902
        %v985 = vadd.f32 %v504, %v907
        %v986 = vadd.f32 %v505, %v910
        %v987 = vadd.f32 %v506, %v915
        %v988 = vadd.f32 %v507, %v918
        %v989 = vadd.f32 %v508, %v923
        %v990 = vadd.f32 %v509, %v926
        %v991 = vadd.f32 %v510, %v931
        %v992 = vadd.f32 %v511, %v934
        %v993 = vadd.f32 %v512, %v939
        %v994 = vadd.f32 %v513, %v942
        %v995 = vadd.f32 %v514, %v947
        %v996 = vadd.f32 %v515, %v950
        %v997 = vadd.f32 %v516, %v955
        %v998 = vadd.f32 %v517, %v958
        %v999 = vadd.f32 %v518, %v963
        %v1000 = vadd.f32 %v519, %v966
        %vm1001 = vcmask 130048
        %1002 = vst.msk [vmem:[#allocation2] sm:$0xff] %vm1001, %v969
        %1003 = vst.msk [vmem:[#allocation2 + $0x8] sm:$0xff] %vm1001, %v970
        %1004 = vst.msk [vmem:[#allocation2 + $0x10] sm:$0xff] %vm1001, %v971
        %1005 = vst.msk [vmem:[#allocation2 + $0x18] sm:$0xff] %vm1001, %v972
        %1006 = vst.msk [vmem:[#allocation2 + $0x20] sm:$0xff] %vm1001, %v973
        %1007 = vst.msk [vmem:[#allocation2 + $0x28] sm:$0xff] %vm1001, %v974
        %1008 = vst.msk [vmem:[#allocation2 + $0x30] sm:$0xff] %vm1001, %v975
        %1009 = vst.msk [vmem:[#allocation2 + $0x38] sm:$0xff] %vm1001, %v976
        %1010 = vst.msk [vmem:[#allocation2 + $0x40] sm:$0xff] %vm1001, %v977
        %1011 = vst.msk [vmem:[#allocation2 + $0x48] sm:$0xff] %vm1001, %v978
        %1012 = vst.msk [vmem:[#allocation2 + $0x50] sm:$0xff] %vm1001, %v979
        %1013 = vst.msk [vmem:[#allocation2 + $0x58] sm:$0xff] %vm1001, %v980
        %1014 = vst.msk [vmem:[#allocation2 + $0x60] sm:$0xff] %vm1001, %v981
        %1015 = vst.msk [vmem:[#allocation2 + $0x68] sm:$0xff] %vm1001, %v982
        %1016 = vst.msk [vmem:[#allocation2 + $0x70] sm:$0xff] %vm1001, %v983
        %1017 = vst.msk [vmem:[#allocation2 + $0x78] sm:$0xff] %vm1001, %v984
        %1018 = vst.msk [vmem:[#allocation2 + $0x80] sm:$0xff] %vm1001, %v985
        %1019 = vst.msk [vmem:[#allocation2 + $0x88] sm:$0xff] %vm1001, %v986
        %1020 = vst.msk [vmem:[#allocation2 + $0x90] sm:$0xff] %vm1001, %v987
        %1021 = vst.msk [vmem:[#allocation2 + $0x98] sm:$0xff] %vm1001, %v988
        %1022 = vst.msk [vmem:[#allocation2 + $0xa0] sm:$0xff] %vm1001, %v989
        %1023 = vst.msk [vmem:[#allocation2 + $0xa8] sm:$0xff] %vm1001, %v990
        %1024 = vst.msk [vmem:[#allocation2 + $0xb0] sm:$0xff] %vm1001, %v991
        %1025 = vst.msk [vmem:[#allocation2 + $0xb8] sm:$0xff] %vm1001, %v992
        %1026 = vst.msk [vmem:[#allocation2 + $0xc0] sm:$0xff] %vm1001, %v993
        %1027 = vst.msk [vmem:[#allocation2 + $0xc8] sm:$0xff] %vm1001, %v994
        %1028 = vst.msk [vmem:[#allocation2 + $0xd0] sm:$0xff] %vm1001, %v995
        %1029 = vst.msk [vmem:[#allocation2 + $0xd8] sm:$0xff] %vm1001, %v996
        %1030 = vst.msk [vmem:[#allocation2 + $0xe0] sm:$0xff] %vm1001, %v997
        %1031 = vst.msk [vmem:[#allocation2 + $0xe8] sm:$0xff] %vm1001, %v998
        %1032 = vst.msk [vmem:[#allocation2 + $0xf0] sm:$0xff] %vm1001, %v999
        %1033 = vst.msk [vmem:[#allocation2 + $0xf8] sm:$0xff] %vm1001, %v1000
        %v1034 = vld [vmem:[#allocation3] sm:$0xff]
        %v1035 = vld [vmem:[#allocation3 + $0x8] sm:$0xff]
        %v1036 = vld [vmem:[#allocation3 + $0x10] sm:$0xff]
        %v1037 = vld [vmem:[#allocation3 + $0x18] sm:$0xff]
        %v1038 = vld [vmem:[#allocation3 + $0x20] sm:$0xff]
        %v1039 = vld [vmem:[#allocation3 + $0x28] sm:$0xff]
        %v1040 = vld [vmem:[#allocation3 + $0x30] sm:$0xff]
        %v1041 = vld [vmem:[#allocation3 + $0x38] sm:$0xff]
        %v1042 = vld [vmem:[#allocation3 + $0x40] sm:$0xff]
        %v1043 = vld [vmem:[#allocation3 + $0x48] sm:$0xff]
        %v1044 = vld [vmem:[#allocation3 + $0x50] sm:$0xff]
        %v1045 = vld [vmem:[#allocation3 + $0x58] sm:$0xff]
        %v1046 = vld [vmem:[#allocation3 + $0x60] sm:$0xff]
        %v1047 = vld [vmem:[#allocation3 + $0x68] sm:$0xff]
        %v1048 = vld [vmem:[#allocation3 + $0x70] sm:$0xff]
        %v1049 = vld [vmem:[#allocation3 + $0x78] sm:$0xff]
        %v1050 = vld [vmem:[#allocation3 + $0x80] sm:$0xff]
        %v1051 = vld [vmem:[#allocation3 + $0x88] sm:$0xff]
        %v1052 = vld [vmem:[#allocation3 + $0x90] sm:$0xff]
        %v1053 = vld [vmem:[#allocation3 + $0x98] sm:$0xff]
        %v1054 = vld [vmem:[#allocation3 + $0xa0] sm:$0xff]
        %v1055 = vld [vmem:[#allocation3 + $0xa8] sm:$0xff]
        %v1056 = vld [vmem:[#allocation3 + $0xb0] sm:$0xff]
        %v1057 = vld [vmem:[#allocation3 + $0xb8] sm:$0xff]
        %v1058 = vld [vmem:[#allocation3 + $0xc0] sm:$0xff]
        %v1059 = vld [vmem:[#allocation3 + $0xc8] sm:$0xff]
        %v1060 = vld [vmem:[#allocation3 + $0xd0] sm:$0xff]
        %v1061 = vld [vmem:[#allocation3 + $0xd8] sm:$0xff]
        %v1062 = vld [vmem:[#allocation3 + $0xe0] sm:$0xff]
        %v1063 = vld [vmem:[#allocation3 + $0xe8] sm:$0xff]
        %v1064 = vld [vmem:[#allocation3 + $0xf0] sm:$0xff]
        %v1065 = vld [vmem:[#allocation3 + $0xf8] sm:$0xff]
        %v1066 = vld [vmem:[%s277] sm:$0xff]
        %v1067 = vld [vmem:[%s277 + $0x8] sm:$0xff]
        %v1068 = vld [vmem:[%s277 + $0x10] sm:$0xff]
        %v1069 = vld [vmem:[%s277 + $0x18] sm:$0xff]
        %v1070 = vld [vmem:[%s277 + $0x20] sm:$0xff]
        %v1071 = vld [vmem:[%s277 + $0x28] sm:$0xff]
        %v1072 = vld [vmem:[%s277 + $0x30] sm:$0xff]
        %v1073 = vld [vmem:[%s277 + $0x38] sm:$0xff]
        %v1074 = vld [vmem:[%s277 + $0x40] sm:$0xff]
        %v1075 = vld [vmem:[%s277 + $0x48] sm:$0xff]
        %v1076 = vld [vmem:[%s277 + $0x50] sm:$0xff]
        %v1077 = vld [vmem:[%s277 + $0x58] sm:$0xff]
        %v1078 = vld [vmem:[%s277 + $0x60] sm:$0xff]
        %v1079 = vld [vmem:[%s277 + $0x68] sm:$0xff]
        %v1080 = vld [vmem:[%s277 + $0x70] sm:$0xff]
        %v1081 = vld [vmem:[%s277 + $0x78] sm:$0xff]
        %v1082 = vld [vmem:[%s277 + $0x80] sm:$0xff]
        %v1083 = vld [vmem:[%s277 + $0x88] sm:$0xff]
        %v1084 = vld [vmem:[%s277 + $0x90] sm:$0xff]
        %v1085 = vld [vmem:[%s277 + $0x98] sm:$0xff]
        %v1086 = vld [vmem:[%s277 + $0xa0] sm:$0xff]
        %v1087 = vld [vmem:[%s277 + $0xa8] sm:$0xff]
        %v1088 = vld [vmem:[%s277 + $0xb0] sm:$0xff]
        %v1089 = vld [vmem:[%s277 + $0xb8] sm:$0xff]
        %v1090 = vld [vmem:[%s277 + $0xc0] sm:$0xff]
        %v1091 = vld [vmem:[%s277 + $0xc8] sm:$0xff]
        %v1092 = vld [vmem:[%s277 + $0xd0] sm:$0xff]
        %v1093 = vld [vmem:[%s277 + $0xd8] sm:$0xff]
        %v1094 = vld [vmem:[%s277 + $0xe0] sm:$0xff]
        %v1095 = vld [vmem:[%s277 + $0xe8] sm:$0xff]
        %v1096 = vld [vmem:[%s277 + $0xf0] sm:$0xff]
        %v1097 = vld [vmem:[%s277 + $0xf8] sm:$0xff]
        %v1130 = vunpack.c.l.b16 %v1066
        %v1131 = vunpack.c.h.b16 %v1066
        %v1132 = vunpack.c.l.b16 %v1067
        %v1133 = vunpack.c.h.b16 %v1067
        %v1134 = vunpack.c.l.b16 %v1068
        %v1135 = vunpack.c.h.b16 %v1068
        %v1136 = vunpack.c.l.b16 %v1069
        %v1137 = vunpack.c.h.b16 %v1069
        %v1138 = vunpack.c.l.b16 %v1070
        %v1139 = vunpack.c.h.b16 %v1070
        %v1140 = vunpack.c.l.b16 %v1071
        %v1141 = vunpack.c.h.b16 %v1071
        %v1142 = vunpack.c.l.b16 %v1072
        %v1143 = vunpack.c.h.b16 %v1072
        %v1144 = vunpack.c.l.b16 %v1073
        %v1145 = vunpack.c.h.b16 %v1073
        %v1146 = vunpack.c.l.b16 %v1074
        %v1147 = vunpack.c.h.b16 %v1074
        %v1148 = vunpack.c.l.b16 %v1075
        %v1149 = vunpack.c.h.b16 %v1075
        %v1150 = vunpack.c.l.b16 %v1076
        %v1151 = vunpack.c.h.b16 %v1076
        %v1152 = vunpack.c.l.b16 %v1077
        %v1153 = vunpack.c.h.b16 %v1077
        %v1154 = vunpack.c.l.b16 %v1078
        %v1155 = vunpack.c.h.b16 %v1078
        %v1156 = vunpack.c.l.b16 %v1079
        %v1157 = vunpack.c.h.b16 %v1079
        %v1158 = vunpack.c.l.b16 %v1080
        %v1159 = vunpack.c.h.b16 %v1080
        %v1160 = vunpack.c.l.b16 %v1081
        %v1161 = vunpack.c.h.b16 %v1081
        %v1162 = vunpack.c.l.b16 %v1082
        %v1163 = vunpack.c.h.b16 %v1082
        %v1164 = vunpack.c.l.b16 %v1083
        %v1165 = vunpack.c.h.b16 %v1083
        %v1166 = vunpack.c.l.b16 %v1084
        %v1167 = vunpack.c.h.b16 %v1084
        %v1168 = vunpack.c.l.b16 %v1085
        %v1169 = vunpack.c.h.b16 %v1085
        %v1170 = vunpack.c.l.b16 %v1086
        %v1171 = vunpack.c.h.b16 %v1086
        %v1172 = vunpack.c.l.b16 %v1087
        %v1173 = vunpack.c.h.b16 %v1087
        %v1174 = vunpack.c.l.b16 %v1088
        %v1175 = vunpack.c.h.b16 %v1088
        %v1176 = vunpack.c.l.b16 %v1089
        %v1177 = vunpack.c.h.b16 %v1089
        %v1178 = vunpack.c.l.b16 %v1090
        %v1179 = vunpack.c.h.b16 %v1090
        %v1180 = vunpack.c.l.b16 %v1091
        %v1181 = vunpack.c.h.b16 %v1091
        %v1182 = vunpack.c.l.b16 %v1092
        %v1183 = vunpack.c.h.b16 %v1092
        %v1184 = vunpack.c.l.b16 %v1093
        %v1185 = vunpack.c.h.b16 %v1093
        %v1186 = vunpack.c.l.b16 %v1094
        %v1187 = vunpack.c.h.b16 %v1094
        %v1188 = vunpack.c.l.b16 %v1095
        %v1189 = vunpack.c.h.b16 %v1095
        %v1190 = vunpack.c.l.b16 %v1096
        %v1191 = vunpack.c.h.b16 %v1096
        %v1192 = vunpack.c.l.b16 %v1097
        %v1193 = vunpack.c.h.b16 %v1097
        %v1194 = vpack.c.b16 %v1132, %v1130
        %v1195 = vpack.c.b16 %v1133, %v1131
        %v1196 = vpack.c.b16 %v1136, %v1134
        %v1197 = vpack.c.b16 %v1137, %v1135
        %v1198 = vpack.c.b16 %v1140, %v1138
        %v1199 = vpack.c.b16 %v1141, %v1139
        %v1200 = vpack.c.b16 %v1144, %v1142
        %v1201 = vpack.c.b16 %v1145, %v1143
        %v1202 = vpack.c.b16 %v1148, %v1146
        %v1203 = vpack.c.b16 %v1149, %v1147
        %v1204 = vpack.c.b16 %v1152, %v1150
        %v1205 = vpack.c.b16 %v1153, %v1151
        %v1206 = vpack.c.b16 %v1156, %v1154
        %v1207 = vpack.c.b16 %v1157, %v1155
        %v1208 = vpack.c.b16 %v1160, %v1158
        %v1209 = vpack.c.b16 %v1161, %v1159
        %v1210 = vpack.c.b16 %v1164, %v1162
        %v1211 = vpack.c.b16 %v1165, %v1163
        %v1212 = vpack.c.b16 %v1168, %v1166
        %v1213 = vpack.c.b16 %v1169, %v1167
        %v1214 = vpack.c.b16 %v1172, %v1170
        %v1215 = vpack.c.b16 %v1173, %v1171
        %v1216 = vpack.c.b16 %v1176, %v1174
        %v1217 = vpack.c.b16 %v1177, %v1175
        %v1218 = vpack.c.b16 %v1180, %v1178
        %v1219 = vpack.c.b16 %v1181, %v1179
        %v1220 = vpack.c.b16 %v1184, %v1182
        %v1221 = vpack.c.b16 %v1185, %v1183
        %v1222 = vpack.c.b16 %v1188, %v1186
        %v1223 = vpack.c.b16 %v1189, %v1187
        %v1224 = vpack.c.b16 %v1192, %v1190
        %v1225 = vpack.c.b16 %v1193, %v1191
        %1258 = vmatprep.subr.bf16.mxu0 0
        %1259 = vmatpush1.bf16.msra.mxu0 %v783
        %1260 = vmatprep.subr.bf16.mxu0 0
        %1261 = vmatpush1.bf16.msra.mxu0 %v782
        %1262 = vmatprep.subr.bf16.mxu0 0
        %1263 = vmatpush1.bf16.msra.mxu0 %v781
        %1264 = vmatprep.subr.bf16.mxu0 0
        %1265 = vmatpush1.bf16.msra.mxu0 %v780
        %1266 = vmatprep.subr.bf16.mxu0 0
        %1267 = vmatpush1.bf16.msra.mxu0 %v779
        %1268 = vmatprep.subr.bf16.mxu0 0
        %1269 = vmatpush1.bf16.msra.mxu0 %v778
        %1270 = vmatprep.subr.bf16.mxu0 0
        %1271 = vmatpush1.bf16.msra.mxu0 %v777
        %1272 = vmatprep.subr.bf16.mxu0 0
        %1273 = vmatpush1.bf16.msra.mxu0 %v776
        %1274 = vmatprep.subr.bf16.mxu0 0
        %1275 = vmatpush2.bf16.msra.mxu0 %v791
        %1276 = vmatprep.subr.bf16.mxu0 0
        %1277 = vmatpush2.bf16.msra.mxu0 %v790
        %1278 = vmatprep.subr.bf16.mxu0 0
        %1279 = vmatpush2.bf16.msra.mxu0 %v789
        %1280 = vmatprep.subr.bf16.mxu0 0
        %1281 = vmatpush2.bf16.msra.mxu0 %v788
        %1282 = vmatprep.subr.bf16.mxu0 0
        %1283 = vmatpush2.bf16.msra.mxu0 %v787
        %1284 = vmatprep.subr.bf16.mxu0 0
        %1285 = vmatpush2.bf16.msra.mxu0 %v786
        %1286 = vmatprep.subr.bf16.mxu0 0
        %1287 = vmatpush2.bf16.msra.mxu0 %v785
        %1288 = vmatprep.subr.bf16.mxu0 0
        %1289 = vmatpush2.bf16.msra.mxu0 %v784
        %1290 = vmatprep.mubr.bf16.mxu0 %v1195
        %1291 = vmatmul.mubr.bf16.gmra.mxu0 %v1194
        %v1292 = vpop.f32.mrf.mxu0
        %v1293 = vadd.f32 0.0, %v1292
        %v1294 = vpop.f32.mrf.mxu0
        %v1295 = vpop.f32.mrf.mxu0
        %v1296 = vadd.f32 0.0, %v1295
        %v1297 = vpop.f32.mrf.mxu0
        %1298 = vmatprep.mubr.bf16.mxu0 %v1197
        %1299 = vmatmul.mubr.bf16.gmra.mxu0 %v1196
        %v1300 = vpop.f32.mrf.mxu0
        %v1301 = vadd.f32 0.0, %v1300
        %v1302 = vpop.f32.mrf.mxu0
        %v1303 = vpop.f32.mrf.mxu0
        %v1304 = vadd.f32 0.0, %v1303
        %v1305 = vpop.f32.mrf.mxu0
        %1306 = vmatprep.mubr.bf16.mxu0 %v1199
        %1307 = vmatmul.mubr.bf16.gmra.mxu0 %v1198
        %v1308 = vpop.f32.mrf.mxu0
        %v1309 = vadd.f32 0.0, %v1308
        %v1310 = vpop.f32.mrf.mxu0
        %v1311 = vpop.f32.mrf.mxu0
        %v1312 = vadd.f32 0.0, %v1311
        %v1313 = vpop.f32.mrf.mxu0
        %1314 = vmatprep.mubr.bf16.mxu0 %v1201
        %1315 = vmatmul.mubr.bf16.gmra.mxu0 %v1200
        %v1316 = vpop.f32.mrf.mxu0
        %v1317 = vadd.f32 0.0, %v1316
        %v1318 = vpop.f32.mrf.mxu0
        %v1319 = vpop.f32.mrf.mxu0
        %v1320 = vadd.f32 0.0, %v1319
        %v1321 = vpop.f32.mrf.mxu0
        %1322 = vmatprep.mubr.bf16.mxu0 %v1203
        %1323 = vmatmul.mubr.bf16.gmra.mxu0 %v1202
        %v1324 = vpop.f32.mrf.mxu0
        %v1325 = vadd.f32 0.0, %v1324
        %v1326 = vpop.f32.mrf.mxu0
        %v1327 = vpop.f32.mrf.mxu0
        %v1328 = vadd.f32 0.0, %v1327
        %v1329 = vpop.f32.mrf.mxu0
        %1330 = vmatprep.mubr.bf16.mxu0 %v1205
        %1331 = vmatmul.mubr.bf16.gmra.mxu0 %v1204
        %v1332 = vpop.f32.mrf.mxu0
        %v1333 = vadd.f32 0.0, %v1332
        %v1334 = vpop.f32.mrf.mxu0
        %v1335 = vpop.f32.mrf.mxu0
        %v1336 = vadd.f32 0.0, %v1335
        %v1337 = vpop.f32.mrf.mxu0
        %1338 = vmatprep.mubr.bf16.mxu0 %v1207
        %1339 = vmatmul.mubr.bf16.gmra.mxu0 %v1206
        %v1340 = vpop.f32.mrf.mxu0
        %v1341 = vadd.f32 0.0, %v1340
        %v1342 = vpop.f32.mrf.mxu0
        %v1343 = vpop.f32.mrf.mxu0
        %v1344 = vadd.f32 0.0, %v1343
        %v1345 = vpop.f32.mrf.mxu0
        %1346 = vmatprep.mubr.bf16.mxu0 %v1209
        %1347 = vmatmul.mubr.bf16.gmra.mxu0 %v1208
        %v1348 = vpop.f32.mrf.mxu0
        %v1349 = vadd.f32 0.0, %v1348
        %v1350 = vpop.f32.mrf.mxu0
        %v1351 = vpop.f32.mrf.mxu0
        %v1352 = vadd.f32 0.0, %v1351
        %v1353 = vpop.f32.mrf.mxu0
        %1354 = vmatprep.mubr.bf16.mxu0 %v1211
        %1355 = vmatmul.mubr.bf16.gmra.mxu0 %v1210
        %v1356 = vpop.f32.mrf.mxu0
        %v1357 = vadd.f32 0.0, %v1356
        %v1358 = vpop.f32.mrf.mxu0
        %v1359 = vpop.f32.mrf.mxu0
        %v1360 = vadd.f32 0.0, %v1359
        %v1361 = vpop.f32.mrf.mxu0
        %1362 = vmatprep.mubr.bf16.mxu0 %v1213
        %1363 = vmatmul.mubr.bf16.gmra.mxu0 %v1212
        %v1364 = vpop.f32.mrf.mxu0
        %v1365 = vadd.f32 0.0, %v1364
        %v1366 = vpop.f32.mrf.mxu0
        %v1367 = vpop.f32.mrf.mxu0
        %v1368 = vadd.f32 0.0, %v1367
        %v1369 = vpop.f32.mrf.mxu0
        %1370 = vmatprep.mubr.bf16.mxu0 %v1215
        %1371 = vmatmul.mubr.bf16.gmra.mxu0 %v1214
        %v1372 = vpop.f32.mrf.mxu0
        %v1373 = vadd.f32 0.0, %v1372
        %v1374 = vpop.f32.mrf.mxu0
        %v1375 = vpop.f32.mrf.mxu0
        %v1376 = vadd.f32 0.0, %v1375
        %v1377 = vpop.f32.mrf.mxu0
        %1378 = vmatprep.mubr.bf16.mxu0 %v1217
        %1379 = vmatmul.mubr.bf16.gmra.mxu0 %v1216
        %v1380 = vpop.f32.mrf.mxu0
        %v1381 = vadd.f32 0.0, %v1380
        %v1382 = vpop.f32.mrf.mxu0
        %v1383 = vpop.f32.mrf.mxu0
        %v1384 = vadd.f32 0.0, %v1383
        %v1385 = vpop.f32.mrf.mxu0
        %1386 = vmatprep.mubr.bf16.mxu0 %v1219
        %1387 = vmatmul.mubr.bf16.gmra.mxu0 %v1218
        %v1388 = vpop.f32.mrf.mxu0
        %v1389 = vadd.f32 0.0, %v1388
        %v1390 = vpop.f32.mrf.mxu0
        %v1391 = vpop.f32.mrf.mxu0
        %v1392 = vadd.f32 0.0, %v1391
        %v1393 = vpop.f32.mrf.mxu0
        %1394 = vmatprep.mubr.bf16.mxu0 %v1221
        %1395 = vmatmul.mubr.bf16.gmra.mxu0 %v1220
        %v1396 = vpop.f32.mrf.mxu0
        %v1397 = vadd.f32 0.0, %v1396
        %v1398 = vpop.f32.mrf.mxu0
        %v1399 = vpop.f32.mrf.mxu0
        %v1400 = vadd.f32 0.0, %v1399
        %v1401 = vpop.f32.mrf.mxu0
        %1402 = vmatprep.mubr.bf16.mxu0 %v1223
        %1403 = vmatmul.mubr.bf16.gmra.mxu0 %v1222
        %v1404 = vpop.f32.mrf.mxu0
        %v1405 = vadd.f32 0.0, %v1404
        %v1406 = vpop.f32.mrf.mxu0
        %v1407 = vpop.f32.mrf.mxu0
        %v1408 = vadd.f32 0.0, %v1407
        %v1409 = vpop.f32.mrf.mxu0
        %1410 = vmatprep.mubr.bf16.mxu0 %v1225
        %1411 = vmatmul.mubr.bf16.gmra.mxu0 %v1224
        %v1412 = vpop.f32.mrf.mxu0
        %v1413 = vadd.f32 0.0, %v1412
        %v1414 = vpop.f32.mrf.mxu0
        %v1415 = vpop.f32.mrf.mxu0
        %v1416 = vadd.f32 0.0, %v1415
        %v1417 = vpop.f32.mrf.mxu0
        %1418 = vdwg.mxu0
        %v1419 = vadd.f32 %v1034, %v1293
        %v1420 = vadd.f32 %v1035, %v1296
        %v1421 = vadd.f32 %v1036, %v1301
        %v1422 = vadd.f32 %v1037, %v1304
        %v1423 = vadd.f32 %v1038, %v1309
        %v1424 = vadd.f32 %v1039, %v1312
        %v1425 = vadd.f32 %v1040, %v1317
        %v1426 = vadd.f32 %v1041, %v1320
        %v1427 = vadd.f32 %v1042, %v1325
        %v1428 = vadd.f32 %v1043, %v1328
        %v1429 = vadd.f32 %v1044, %v1333
        %v1430 = vadd.f32 %v1045, %v1336
        %v1431 = vadd.f32 %v1046, %v1341
        %v1432 = vadd.f32 %v1047, %v1344
        %v1433 = vadd.f32 %v1048, %v1349
        %v1434 = vadd.f32 %v1049, %v1352
        %v1435 = vadd.f32 %v1050, %v1357
        %v1436 = vadd.f32 %v1051, %v1360
        %v1437 = vadd.f32 %v1052, %v1365
        %v1438 = vadd.f32 %v1053, %v1368
        %v1439 = vadd.f32 %v1054, %v1373
        %v1440 = vadd.f32 %v1055, %v1376
        %v1441 = vadd.f32 %v1056, %v1381
        %v1442 = vadd.f32 %v1057, %v1384
        %v1443 = vadd.f32 %v1058, %v1389
        %v1444 = vadd.f32 %v1059, %v1392
        %v1445 = vadd.f32 %v1060, %v1397
        %v1446 = vadd.f32 %v1061, %v1400
        %v1447 = vadd.f32 %v1062, %v1405
        %v1448 = vadd.f32 %v1063, %v1408
        %v1449 = vadd.f32 %v1064, %v1413
        %v1450 = vadd.f32 %v1065, %v1416
        %1451 = vst.msk [vmem:[#allocation3] sm:$0xff] %vm1001, %v1419
        %1452 = vst.msk [vmem:[#allocation3 + $0x8] sm:$0xff] %vm1001, %v1420
        %1453 = vst.msk [vmem:[#allocation3 + $0x10] sm:$0xff] %vm1001, %v1421
        %1454 = vst.msk [vmem:[#allocation3 + $0x18] sm:$0xff] %vm1001, %v1422
        %1455 = vst.msk [vmem:[#allocation3 + $0x20] sm:$0xff] %vm1001, %v1423
        %1456 = vst.msk [vmem:[#allocation3 + $0x28] sm:$0xff] %vm1001, %v1424
        %1457 = vst.msk [vmem:[#allocation3 + $0x30] sm:$0xff] %vm1001, %v1425
        %1458 = vst.msk [vmem:[#allocation3 + $0x38] sm:$0xff] %vm1001, %v1426
        %1459 = vst.msk [vmem:[#allocation3 + $0x40] sm:$0xff] %vm1001, %v1427
        %1460 = vst.msk [vmem:[#allocation3 + $0x48] sm:$0xff] %vm1001, %v1428
        %1461 = vst.msk [vmem:[#allocation3 + $0x50] sm:$0xff] %vm1001, %v1429
        %1462 = vst.msk [vmem:[#allocation3 + $0x58] sm:$0xff] %vm1001, %v1430
        %1463 = vst.msk [vmem:[#allocation3 + $0x60] sm:$0xff] %vm1001, %v1431
        %1464 = vst.msk [vmem:[#allocation3 + $0x68] sm:$0xff] %vm1001, %v1432
        %1465 = vst.msk [vmem:[#allocation3 + $0x70] sm:$0xff] %vm1001, %v1433
        %1466 = vst.msk [vmem:[#allocation3 + $0x78] sm:$0xff] %vm1001, %v1434
        %1467 = vst.msk [vmem:[#allocation3 + $0x80] sm:$0xff] %vm1001, %v1435
        %1468 = vst.msk [vmem:[#allocation3 + $0x88] sm:$0xff] %vm1001, %v1436
        %1469 = vst.msk [vmem:[#allocation3 + $0x90] sm:$0xff] %vm1001, %v1437
        %1470 = vst.msk [vmem:[#allocation3 + $0x98] sm:$0xff] %vm1001, %v1438
        %1471 = vst.msk [vmem:[#allocation3 + $0xa0] sm:$0xff] %vm1001, %v1439
        %1472 = vst.msk [vmem:[#allocation3 + $0xa8] sm:$0xff] %vm1001, %v1440
        %1473 = vst.msk [vmem:[#allocation3 + $0xb0] sm:$0xff] %vm1001, %v1441
        %1474 = vst.msk [vmem:[#allocation3 + $0xb8] sm:$0xff] %vm1001, %v1442
        %1475 = vst.msk [vmem:[#allocation3 + $0xc0] sm:$0xff] %vm1001, %v1443
        %1476 = vst.msk [vmem:[#allocation3 + $0xc8] sm:$0xff] %vm1001, %v1444
        %1477 = vst.msk [vmem:[#allocation3 + $0xd0] sm:$0xff] %vm1001, %v1445
        %1478 = vst.msk [vmem:[#allocation3 + $0xd8] sm:$0xff] %vm1001, %v1446
        %1479 = vst.msk [vmem:[#allocation3 + $0xe0] sm:$0xff] %vm1001, %v1447
        %1480 = vst.msk [vmem:[#allocation3 + $0xe8] sm:$0xff] %vm1001, %v1448
        %1481 = vst.msk [vmem:[#allocation3 + $0xf0] sm:$0xff] %vm1001, %v1449
        %1482 = vst.msk [vmem:[#allocation3 + $0xf8] sm:$0xff] %vm1001, %v1450
        // Predicated region
        $region45: #{tpu_custom_call.1} parent=35 // pred_check
          %p1483 = pneg %p387
        $region46: #{tpu_custom_call.1} parent=35 // pred_check_branch
          %1485 = sbr.rel (%p1483) target = $region48
        $region47: #{tpu_custom_call.1} parent=35 // pred_region
          %v1486 = vld [vmem:[%s374] sm:$0xf]
          %v1487 = vld [vmem:[%s374 + $0x4] sm:$0xf]
          %v1488 = vld [vmem:[%s374 + $0x8] sm:$0xf]
          %v1489 = vld [vmem:[%s374 + $0xc] sm:$0xf]
          %v1490 = vld [vmem:[%s374 + $0x10] sm:$0xf]
          %v1491 = vld [vmem:[%s374 + $0x14] sm:$0xf]
          %v1492 = vld [vmem:[%s374 + $0x18] sm:$0xf]
          %v1493 = vld [vmem:[%s374 + $0x1c] sm:$0xf]
          %v1494 = vld [vmem:[%s374 + $0x20] sm:$0xf]
          %v1495 = vld [vmem:[%s374 + $0x24] sm:$0xf]
          %v1496 = vld [vmem:[%s374 + $0x28] sm:$0xf]
          %v1497 = vld [vmem:[%s374 + $0x2c] sm:$0xf]
          %v1498 = vld [vmem:[%s374 + $0x30] sm:$0xf]
          %v1499 = vld [vmem:[%s374 + $0x34] sm:$0xf]
          %v1500 = vld [vmem:[%s374 + $0x38] sm:$0xf]
          %v1501 = vld [vmem:[%s374 + $0x3c] sm:$0xf]
          %v1502 = vld [vmem:[%s374 + $0x40] sm:$0xf]
          %v1503 = vld [vmem:[%s374 + $0x44] sm:$0xf]
          %v1504 = vld [vmem:[%s374 + $0x48] sm:$0xf]
          %v1505 = vld [vmem:[%s374 + $0x4c] sm:$0xf]
          %v1506 = vld [vmem:[%s374 + $0x50] sm:$0xf]
          %v1507 = vld [vmem:[%s374 + $0x54] sm:$0xf]
          %v1508 = vld [vmem:[%s374 + $0x58] sm:$0xf]
          %v1509 = vld [vmem:[%s374 + $0x5c] sm:$0xf]
          %v1510 = vld [vmem:[%s374 + $0x60] sm:$0xf]
          %v1511 = vld [vmem:[%s374 + $0x64] sm:$0xf]
          %v1512 = vld [vmem:[%s374 + $0x68] sm:$0xf]
          %v1513 = vld [vmem:[%s374 + $0x6c] sm:$0xf]
          %v1514 = vld [vmem:[%s374 + $0x70] sm:$0xf]
          %v1515 = vld [vmem:[%s374 + $0x74] sm:$0xf]
          %v1516 = vld [vmem:[%s374 + $0x78] sm:$0xf]
          %v1517 = vld [vmem:[%s374 + $0x7c] sm:$0xf]
          %vm1518 = vcmask 125952
          %1519 = vst.msk [vmem:[%s384] sm:$0xf] %vm1518, %v1486
          %1520 = vst.msk [vmem:[%s384 + $0x4] sm:$0xf] %vm1518, %v1487
          %1521 = vst.msk [vmem:[%s384 + $0x8] sm:$0xf] %vm1518, %v1488
          %1522 = vst.msk [vmem:[%s384 + $0xc] sm:$0xf] %vm1518, %v1489
          %1523 = vst.msk [vmem:[%s384 + $0x10] sm:$0xf] %vm1518, %v1490
          %1524 = vst.msk [vmem:[%s384 + $0x14] sm:$0xf] %vm1518, %v1491
          %1525 = vst.msk [vmem:[%s384 + $0x18] sm:$0xf] %vm1518, %v1492
          %1526 = vst.msk [vmem:[%s384 + $0x1c] sm:$0xf] %vm1518, %v1493
          %1527 = vst.msk [vmem:[%s384 + $0x20] sm:$0xf] %vm1518, %v1494
          %1528 = vst.msk [vmem:[%s384 + $0x24] sm:$0xf] %vm1518, %v1495
          %1529 = vst.msk [vmem:[%s384 + $0x28] sm:$0xf] %vm1518, %v1496
          %1530 = vst.msk [vmem:[%s384 + $0x2c] sm:$0xf] %vm1518, %v1497
          %1531 = vst.msk [vmem:[%s384 + $0x30] sm:$0xf] %vm1518, %v1498
          %1532 = vst.msk [vmem:[%s384 + $0x34] sm:$0xf] %vm1518, %v1499
          %1533 = vst.msk [vmem:[%s384 + $0x38] sm:$0xf] %vm1518, %v1500
          %1534 = vst.msk [vmem:[%s384 + $0x3c] sm:$0xf] %vm1518, %v1501
          %1535 = vst.msk [vmem:[%s384 + $0x40] sm:$0xf] %vm1518, %v1502
          %1536 = vst.msk [vmem:[%s384 + $0x44] sm:$0xf] %vm1518, %v1503
          %1537 = vst.msk [vmem:[%s384 + $0x48] sm:$0xf] %vm1518, %v1504
          %1538 = vst.msk [vmem:[%s384 + $0x4c] sm:$0xf] %vm1518, %v1505
          %1539 = vst.msk [vmem:[%s384 + $0x50] sm:$0xf] %vm1518, %v1506
          %1540 = vst.msk [vmem:[%s384 + $0x54] sm:$0xf] %vm1518, %v1507
          %1541 = vst.msk [vmem:[%s384 + $0x58] sm:$0xf] %vm1518, %v1508
          %1542 = vst.msk [vmem:[%s384 + $0x5c] sm:$0xf] %vm1518, %v1509
          %1543 = vst.msk [vmem:[%s384 + $0x60] sm:$0xf] %vm1518, %v1510
          %1544 = vst.msk [vmem:[%s384 + $0x64] sm:$0xf] %vm1518, %v1511
          %1545 = vst.msk [vmem:[%s384 + $0x68] sm:$0xf] %vm1518, %v1512
          %1546 = vst.msk [vmem:[%s384 + $0x6c] sm:$0xf] %vm1518, %v1513
          %1547 = vst.msk [vmem:[%s384 + $0x70] sm:$0xf] %vm1518, %v1514
          %1548 = vst.msk [vmem:[%s384 + $0x74] sm:$0xf] %vm1518, %v1515
          %1549 = vst.msk [vmem:[%s384 + $0x78] sm:$0xf] %vm1518, %v1516
          %1550 = vst.msk [vmem:[%s384 + $0x7c] sm:$0xf] %vm1518, %v1517
          %v1551 = vld [vmem:[#allocation2] sm:$0xff]
          %v1552 = vld [vmem:[#allocation2 + $0x8] sm:$0xff]
          %v1553 = vld [vmem:[#allocation2 + $0x10] sm:$0xff]
          %v1554 = vld [vmem:[#allocation2 + $0x18] sm:$0xff]
          %v1555 = vld [vmem:[#allocation2 + $0x20] sm:$0xff]
          %v1556 = vld [vmem:[#allocation2 + $0x28] sm:$0xff]
          %v1557 = vld [vmem:[#allocation2 + $0x30] sm:$0xff]
          %v1558 = vld [vmem:[#allocation2 + $0x38] sm:$0xff]
          %v1559 = vld [vmem:[#allocation2 + $0x40] sm:$0xff]
          %v1560 = vld [vmem:[#allocation2 + $0x48] sm:$0xff]
          %v1561 = vld [vmem:[#allocation2 + $0x50] sm:$0xff]
          %v1562 = vld [vmem:[#allocation2 + $0x58] sm:$0xff]
          %v1563 = vld [vmem:[#allocation2 + $0x60] sm:$0xff]
          %v1564 = vld [vmem:[#allocation2 + $0x68] sm:$0xff]
          %v1565 = vld [vmem:[#allocation2 + $0x70] sm:$0xff]
          %v1566 = vld [vmem:[#allocation2 + $0x78] sm:$0xff]
          %v1567 = vld [vmem:[#allocation2 + $0x80] sm:$0xff]
          %v1568 = vld [vmem:[#allocation2 + $0x88] sm:$0xff]
          %v1569 = vld [vmem:[#allocation2 + $0x90] sm:$0xff]
          %v1570 = vld [vmem:[#allocation2 + $0x98] sm:$0xff]
          %v1571 = vld [vmem:[#allocation2 + $0xa0] sm:$0xff]
          %v1572 = vld [vmem:[#allocation2 + $0xa8] sm:$0xff]
          %v1573 = vld [vmem:[#allocation2 + $0xb0] sm:$0xff]
          %v1574 = vld [vmem:[#allocation2 + $0xb8] sm:$0xff]
          %v1575 = vld [vmem:[#allocation2 + $0xc0] sm:$0xff]
          %v1576 = vld [vmem:[#allocation2 + $0xc8] sm:$0xff]
          %v1577 = vld [vmem:[#allocation2 + $0xd0] sm:$0xff]
          %v1578 = vld [vmem:[#allocation2 + $0xd8] sm:$0xff]
          %v1579 = vld [vmem:[#allocation2 + $0xe0] sm:$0xff]
          %v1580 = vld [vmem:[#allocation2 + $0xe8] sm:$0xff]
          %v1581 = vld [vmem:[#allocation2 + $0xf0] sm:$0xff]
          %v1582 = vld [vmem:[#allocation2 + $0xf8] sm:$0xff]
          %v1583 = vpack.c.bf16 %v1552, %v1551
          %v1584 = vpack.c.bf16 %v1554, %v1553
          %v1585 = vpack.c.bf16 %v1556, %v1555
          %v1586 = vpack.c.bf16 %v1558, %v1557
          %v1587 = vpack.c.bf16 %v1560, %v1559
          %v1588 = vpack.c.bf16 %v1562, %v1561
          %v1589 = vpack.c.bf16 %v1564, %v1563
          %v1590 = vpack.c.bf16 %v1566, %v1565
          %v1591 = vpack.c.bf16 %v1568, %v1567
          %v1592 = vpack.c.bf16 %v1570, %v1569
          %v1593 = vpack.c.bf16 %v1572, %v1571
          %v1594 = vpack.c.bf16 %v1574, %v1573
          %v1595 = vpack.c.bf16 %v1576, %v1575
          %v1596 = vpack.c.bf16 %v1578, %v1577
          %v1597 = vpack.c.bf16 %v1580, %v1579
          %v1598 = vpack.c.bf16 %v1582, %v1581
          %v1615 = vunpack.c.l.b16 %v1583
          %v1616 = vunpack.c.h.b16 %v1583
          %v1617 = vunpack.c.l.b16 %v1584
          %v1618 = vunpack.c.h.b16 %v1584
          %v1619 = vunpack.c.l.b16 %v1585
          %v1620 = vunpack.c.h.b16 %v1585
          %v1621 = vunpack.c.l.b16 %v1586
          %v1622 = vunpack.c.h.b16 %v1586
          %v1623 = vunpack.c.l.b16 %v1587
          %v1624 = vunpack.c.h.b16 %v1587
          %v1625 = vunpack.c.l.b16 %v1588
          %v1626 = vunpack.c.h.b16 %v1588
          %v1627 = vunpack.c.l.b16 %v1589
          %v1628 = vunpack.c.h.b16 %v1589
          %v1629 = vunpack.c.l.b16 %v1590
          %v1630 = vunpack.c.h.b16 %v1590
          %v1631 = vunpack.c.l.b16 %v1591
          %v1632 = vunpack.c.h.b16 %v1591
          %v1633 = vunpack.c.l.b16 %v1592
          %v1634 = vunpack.c.h.b16 %v1592
          %v1635 = vunpack.c.l.b16 %v1593
          %v1636 = vunpack.c.h.b16 %v1593
          %v1637 = vunpack.c.l.b16 %v1594
          %v1638 = vunpack.c.h.b16 %v1594
          %v1639 = vunpack.c.l.b16 %v1595
          %v1640 = vunpack.c.h.b16 %v1595
          %v1641 = vunpack.c.l.b16 %v1596
          %v1642 = vunpack.c.h.b16 %v1596
          %v1643 = vunpack.c.l.b16 %v1597
          %v1644 = vunpack.c.h.b16 %v1597
          %v1645 = vunpack.c.l.b16 %v1598
          %v1646 = vunpack.c.h.b16 %v1598
          %v1647 = vpack.c.b16 %v1615, %v1615
          %v1648 = vpack.c.b16 %v1616, %v1616
          %v1649 = vpack.c.b16 %v1617, %v1617
          %v1650 = vpack.c.b16 %v1618, %v1618
          %v1651 = vpack.c.b16 %v1619, %v1619
          %v1652 = vpack.c.b16 %v1620, %v1620
          %v1653 = vpack.c.b16 %v1621, %v1621
          %v1654 = vpack.c.b16 %v1622, %v1622
          %v1655 = vpack.c.b16 %v1623, %v1623
          %v1656 = vpack.c.b16 %v1624, %v1624
          %v1657 = vpack.c.b16 %v1625, %v1625
          %v1658 = vpack.c.b16 %v1626, %v1626
          %v1659 = vpack.c.b16 %v1627, %v1627
          %v1660 = vpack.c.b16 %v1628, %v1628
          %v1661 = vpack.c.b16 %v1629, %v1629
          %v1662 = vpack.c.b16 %v1630, %v1630
          %v1663 = vpack.c.b16 %v1631, %v1631
          %v1664 = vpack.c.b16 %v1632, %v1632
          %v1665 = vpack.c.b16 %v1633, %v1633
          %v1666 = vpack.c.b16 %v1634, %v1634
          %v1667 = vpack.c.b16 %v1635, %v1635
          %v1668 = vpack.c.b16 %v1636, %v1636
          %v1669 = vpack.c.b16 %v1637, %v1637
          %v1670 = vpack.c.b16 %v1638, %v1638
          %v1671 = vpack.c.b16 %v1639, %v1639
          %v1672 = vpack.c.b16 %v1640, %v1640
          %v1673 = vpack.c.b16 %v1641, %v1641
          %v1674 = vpack.c.b16 %v1642, %v1642
          %v1675 = vpack.c.b16 %v1643, %v1643
          %v1676 = vpack.c.b16 %v1644, %v1644
          %v1677 = vpack.c.b16 %v1645, %v1645
          %v1678 = vpack.c.b16 %v1646, %v1646
          %s1711 = scalar_lea.vmem %s384, 128
          %1712 = vst.msk [vmem:[%s1711] sm:$0xf] %vm1518, %v1647
          %1713 = vst.msk [vmem:[%s1711 + $0x4] sm:$0xf] %vm1518, %v1648
          %1714 = vst.msk [vmem:[%s1711 + $0x8] sm:$0xf] %vm1518, %v1649
          %1715 = vst.msk [vmem:[%s1711 + $0xc] sm:$0xf] %vm1518, %v1650
          %1716 = vst.msk [vmem:[%s1711 + $0x10] sm:$0xf] %vm1518, %v1651
          %1717 = vst.msk [vmem:[%s1711 + $0x14] sm:$0xf] %vm1518, %v1652
          %1718 = vst.msk [vmem:[%s1711 + $0x18] sm:$0xf] %vm1518, %v1653
          %1719 = vst.msk [vmem:[%s1711 + $0x1c] sm:$0xf] %vm1518, %v1654
          %1720 = vst.msk [vmem:[%s1711 + $0x20] sm:$0xf] %vm1518, %v1655
          %1721 = vst.msk [vmem:[%s1711 + $0x24] sm:$0xf] %vm1518, %v1656
          %1722 = vst.msk [vmem:[%s1711 + $0x28] sm:$0xf] %vm1518, %v1657
          %1723 = vst.msk [vmem:[%s1711 + $0x2c] sm:$0xf] %vm1518, %v1658
          %1724 = vst.msk [vmem:[%s1711 + $0x30] sm:$0xf] %vm1518, %v1659
          %1725 = vst.msk [vmem:[%s1711 + $0x34] sm:$0xf] %vm1518, %v1660
          %1726 = vst.msk [vmem:[%s1711 + $0x38] sm:$0xf] %vm1518, %v1661
          %1727 = vst.msk [vmem:[%s1711 + $0x3c] sm:$0xf] %vm1518, %v1662
          %1728 = vst.msk [vmem:[%s1711 + $0x40] sm:$0xf] %vm1518, %v1663
          %1729 = vst.msk [vmem:[%s1711 + $0x44] sm:$0xf] %vm1518, %v1664
          %1730 = vst.msk [vmem:[%s1711 + $0x48] sm:$0xf] %vm1518, %v1665
          %1731 = vst.msk [vmem:[%s1711 + $0x4c] sm:$0xf] %vm1518, %v1666
          %1732 = vst.msk [vmem:[%s1711 + $0x50] sm:$0xf] %vm1518, %v1667
          %1733 = vst.msk [vmem:[%s1711 + $0x54] sm:$0xf] %vm1518, %v1668
          %1734 = vst.msk [vmem:[%s1711 + $0x58] sm:$0xf] %vm1518, %v1669
          %1735 = vst.msk [vmem:[%s1711 + $0x5c] sm:$0xf] %vm1518, %v1670
          %1736 = vst.msk [vmem:[%s1711 + $0x60] sm:$0xf] %vm1518, %v1671
          %1737 = vst.msk [vmem:[%s1711 + $0x64] sm:$0xf] %vm1518, %v1672
          %1738 = vst.msk [vmem:[%s1711 + $0x68] sm:$0xf] %vm1518, %v1673
          %1739 = vst.msk [vmem:[%s1711 + $0x6c] sm:$0xf] %vm1518, %v1674
          %1740 = vst.msk [vmem:[%s1711 + $0x70] sm:$0xf] %vm1518, %v1675
          %1741 = vst.msk [vmem:[%s1711 + $0x74] sm:$0xf] %vm1518, %v1676
          %1742 = vst.msk [vmem:[%s1711 + $0x78] sm:$0xf] %vm1518, %v1677
          %1743 = vst.msk [vmem:[%s1711 + $0x7c] sm:$0xf] %vm1518, %v1678
          %v1744 = vld [vmem:[#allocation3] sm:$0xff]
          %v1745 = vld [vmem:[#allocation3 + $0x8] sm:$0xff]
          %v1746 = vld [vmem:[#allocation3 + $0x10] sm:$0xff]
          %v1747 = vld [vmem:[#allocation3 + $0x18] sm:$0xff]
          %v1748 = vld [vmem:[#allocation3 + $0x20] sm:$0xff]
          %v1749 = vld [vmem:[#allocation3 + $0x28] sm:$0xff]
          %v1750 = vld [vmem:[#allocation3 + $0x30] sm:$0xff]
          %v1751 = vld [vmem:[#allocation3 + $0x38] sm:$0xff]
          %v1752 = vld [vmem:[#allocation3 + $0x40] sm:$0xff]
          %v1753 = vld [vmem:[#allocation3 + $0x48] sm:$0xff]
          %v1754 = vld [vmem:[#allocation3 + $0x50] sm:$0xff]
          %v1755 = vld [vmem:[#allocation3 + $0x58] sm:$0xff]
          %v1756 = vld [vmem:[#allocation3 + $0x60] sm:$0xff]
          %v1757 = vld [vmem:[#allocation3 + $0x68] sm:$0xff]
          %v1758 = vld [vmem:[#allocation3 + $0x70] sm:$0xff]
          %v1759 = vld [vmem:[#allocation3 + $0x78] sm:$0xff]
          %v1760 = vld [vmem:[#allocation3 + $0x80] sm:$0xff]
          %v1761 = vld [vmem:[#allocation3 + $0x88] sm:$0xff]
          %v1762 = vld [vmem:[#allocation3 + $0x90] sm:$0xff]
          %v1763 = vld [vmem:[#allocation3 + $0x98] sm:$0xff]
          %v1764 = vld [vmem:[#allocation3 + $0xa0] sm:$0xff]
          %v1765 = vld [vmem:[#allocation3 + $0xa8] sm:$0xff]
          %v1766 = vld [vmem:[#allocation3 + $0xb0] sm:$0xff]
          %v1767 = vld [vmem:[#allocation3 + $0xb8] sm:$0xff]
          %v1768 = vld [vmem:[#allocation3 + $0xc0] sm:$0xff]
          %v1769 = vld [vmem:[#allocation3 + $0xc8] sm:$0xff]
          %v1770 = vld [vmem:[#allocation3 + $0xd0] sm:$0xff]
          %v1771 = vld [vmem:[#allocation3 + $0xd8] sm:$0xff]
          %v1772 = vld [vmem:[#allocation3 + $0xe0] sm:$0xff]
          %v1773 = vld [vmem:[#allocation3 + $0xe8] sm:$0xff]
          %v1774 = vld [vmem:[#allocation3 + $0xf0] sm:$0xff]
          %v1775 = vld [vmem:[#allocation3 + $0xf8] sm:$0xff]
          %v1776 = vpack.c.bf16 %v1745, %v1744
          %v1777 = vpack.c.bf16 %v1747, %v1746
          %v1778 = vpack.c.bf16 %v1749, %v1748
          %v1779 = vpack.c.bf16 %v1751, %v1750
          %v1780 = vpack.c.bf16 %v1753, %v1752
          %v1781 = vpack.c.bf16 %v1755, %v1754
          %v1782 = vpack.c.bf16 %v1757, %v1756
          %v1783 = vpack.c.bf16 %v1759, %v1758
          %v1784 = vpack.c.bf16 %v1761, %v1760
          %v1785 = vpack.c.bf16 %v1763, %v1762
          %v1786 = vpack.c.bf16 %v1765, %v1764
          %v1787 = vpack.c.bf16 %v1767, %v1766
          %v1788 = vpack.c.bf16 %v1769, %v1768
          %v1789 = vpack.c.bf16 %v1771, %v1770
          %v1790 = vpack.c.bf16 %v1773, %v1772
          %v1791 = vpack.c.bf16 %v1775, %v1774
          %v1808 = vunpack.c.l.b16 %v1776
          %v1809 = vunpack.c.h.b16 %v1776
          %v1810 = vunpack.c.l.b16 %v1777
          %v1811 = vunpack.c.h.b16 %v1777
          %v1812 = vunpack.c.l.b16 %v1778
          %v1813 = vunpack.c.h.b16 %v1778
          %v1814 = vunpack.c.l.b16 %v1779
          %v1815 = vunpack.c.h.b16 %v1779
          %v1816 = vunpack.c.l.b16 %v1780
          %v1817 = vunpack.c.h.b16 %v1780
          %v1818 = vunpack.c.l.b16 %v1781
          %v1819 = vunpack.c.h.b16 %v1781
          %v1820 = vunpack.c.l.b16 %v1782
          %v1821 = vunpack.c.h.b16 %v1782
          %v1822 = vunpack.c.l.b16 %v1783
          %v1823 = vunpack.c.h.b16 %v1783
          %v1824 = vunpack.c.l.b16 %v1784
          %v1825 = vunpack.c.h.b16 %v1784
          %v1826 = vunpack.c.l.b16 %v1785
          %v1827 = vunpack.c.h.b16 %v1785
          %v1828 = vunpack.c.l.b16 %v1786
          %v1829 = vunpack.c.h.b16 %v1786
          %v1830 = vunpack.c.l.b16 %v1787
          %v1831 = vunpack.c.h.b16 %v1787
          %v1832 = vunpack.c.l.b16 %v1788
          %v1833 = vunpack.c.h.b16 %v1788
          %v1834 = vunpack.c.l.b16 %v1789
          %v1835 = vunpack.c.h.b16 %v1789
          %v1836 = vunpack.c.l.b16 %v1790
          %v1837 = vunpack.c.h.b16 %v1790
          %v1838 = vunpack.c.l.b16 %v1791
          %v1839 = vunpack.c.h.b16 %v1791
          %v1840 = vpack.c.b16 %v1808, %v1808
          %v1841 = vpack.c.b16 %v1809, %v1809
          %v1842 = vpack.c.b16 %v1810, %v1810
          %v1843 = vpack.c.b16 %v1811, %v1811
          %v1844 = vpack.c.b16 %v1812, %v1812
          %v1845 = vpack.c.b16 %v1813, %v1813
          %v1846 = vpack.c.b16 %v1814, %v1814
          %v1847 = vpack.c.b16 %v1815, %v1815
          %v1848 = vpack.c.b16 %v1816, %v1816
          %v1849 = vpack.c.b16 %v1817, %v1817
          %v1850 = vpack.c.b16 %v1818, %v1818
          %v1851 = vpack.c.b16 %v1819, %v1819
          %v1852 = vpack.c.b16 %v1820, %v1820
          %v1853 = vpack.c.b16 %v1821, %v1821
          %v1854 = vpack.c.b16 %v1822, %v1822
          %v1855 = vpack.c.b16 %v1823, %v1823
          %v1856 = vpack.c.b16 %v1824, %v1824
          %v1857 = vpack.c.b16 %v1825, %v1825
          %v1858 = vpack.c.b16 %v1826, %v1826
          %v1859 = vpack.c.b16 %v1827, %v1827
          %v1860 = vpack.c.b16 %v1828, %v1828
          %v1861 = vpack.c.b16 %v1829, %v1829
          %v1862 = vpack.c.b16 %v1830, %v1830
          %v1863 = vpack.c.b16 %v1831, %v1831
          %v1864 = vpack.c.b16 %v1832, %v1832
          %v1865 = vpack.c.b16 %v1833, %v1833
          %v1866 = vpack.c.b16 %v1834, %v1834
          %v1867 = vpack.c.b16 %v1835, %v1835
          %v1868 = vpack.c.b16 %v1836, %v1836
          %v1869 = vpack.c.b16 %v1837, %v1837
          %v1870 = vpack.c.b16 %v1838, %v1838
          %v1871 = vpack.c.b16 %v1839, %v1839
          %s1904 = scalar_lea.vmem %s384, 256
          %1905 = vst.msk [vmem:[%s1904] sm:$0xf] %vm1518, %v1840
          %1906 = vst.msk [vmem:[%s1904 + $0x4] sm:$0xf] %vm1518, %v1841
          %1907 = vst.msk [vmem:[%s1904 + $0x8] sm:$0xf] %vm1518, %v1842
          %1908 = vst.msk [vmem:[%s1904 + $0xc] sm:$0xf] %vm1518, %v1843
          %1909 = vst.msk [vmem:[%s1904 + $0x10] sm:$0xf] %vm1518, %v1844
          %1910 = vst.msk [vmem:[%s1904 + $0x14] sm:$0xf] %vm1518, %v1845
          %1911 = vst.msk [vmem:[%s1904 + $0x18] sm:$0xf] %vm1518, %v1846
          %1912 = vst.msk [vmem:[%s1904 + $0x1c] sm:$0xf] %vm1518, %v1847
          %1913 = vst.msk [vmem:[%s1904 + $0x20] sm:$0xf] %vm1518, %v1848
          %1914 = vst.msk [vmem:[%s1904 + $0x24] sm:$0xf] %vm1518, %v1849
          %1915 = vst.msk [vmem:[%s1904 + $0x28] sm:$0xf] %vm1518, %v1850
          %1916 = vst.msk [vmem:[%s1904 + $0x2c] sm:$0xf] %vm1518, %v1851
          %1917 = vst.msk [vmem:[%s1904 + $0x30] sm:$0xf] %vm1518, %v1852
          %1918 = vst.msk [vmem:[%s1904 + $0x34] sm:$0xf] %vm1518, %v1853
          %1919 = vst.msk [vmem:[%s1904 + $0x38] sm:$0xf] %vm1518, %v1854
          %1920 = vst.msk [vmem:[%s1904 + $0x3c] sm:$0xf] %vm1518, %v1855
          %1921 = vst.msk [vmem:[%s1904 + $0x40] sm:$0xf] %vm1518, %v1856
          %1922 = vst.msk [vmem:[%s1904 + $0x44] sm:$0xf] %vm1518, %v1857
          %1923 = vst.msk [vmem:[%s1904 + $0x48] sm:$0xf] %vm1518, %v1858
          %1924 = vst.msk [vmem:[%s1904 + $0x4c] sm:$0xf] %vm1518, %v1859
          %1925 = vst.msk [vmem:[%s1904 + $0x50] sm:$0xf] %vm1518, %v1860
          %1926 = vst.msk [vmem:[%s1904 + $0x54] sm:$0xf] %vm1518, %v1861
          %1927 = vst.msk [vmem:[%s1904 + $0x58] sm:$0xf] %vm1518, %v1862
          %1928 = vst.msk [vmem:[%s1904 + $0x5c] sm:$0xf] %vm1518, %v1863
          %1929 = vst.msk [vmem:[%s1904 + $0x60] sm:$0xf] %vm1518, %v1864
          %1930 = vst.msk [vmem:[%s1904 + $0x64] sm:$0xf] %vm1518, %v1865
          %1931 = vst.msk [vmem:[%s1904 + $0x68] sm:$0xf] %vm1518, %v1866
          %1932 = vst.msk [vmem:[%s1904 + $0x6c] sm:$0xf] %vm1518, %v1867
          %1933 = vst.msk [vmem:[%s1904 + $0x70] sm:$0xf] %vm1518, %v1868
          %1934 = vst.msk [vmem:[%s1904 + $0x74] sm:$0xf] %vm1518, %v1869
          %1935 = vst.msk [vmem:[%s1904 + $0x78] sm:$0xf] %vm1518, %v1870
          %1936 = vst.msk [vmem:[%s1904 + $0x7c] sm:$0xf] %vm1518, %v1871
        $region48: #{tpu_custom_call.1} parent=35 // pred_fallthru
          _
        %s1937 = smul.u32 32, %s24
        %p1938 = scmp.lt.s32.totalorder %s23, 1
        %s1939 = scalar_select %p1938, %s23, 1
        %p1940 = scmp.lt.s32.totalorder %s1937, 31
        %s1941 = scalar_select %p1940, %s1937, 31
        %s1942 = smul.addr %s1939, 96
        %s1943 = sadd.s32 %s1941, %s1942
        %s1944 = smul.addr %s1943, 4
        %s1945 = scalar_lea.vmem %s4, %s1944
        // Predicated region
        $region49: #{tpu_custom_call.1} parent=35 // pred_check
          %p1946 = pneg %p173
        $region50: #{tpu_custom_call.1} parent=35 // pred_check_branch
          %1948 = sbr.rel (%p1946) target = $region52
        $region51: #{tpu_custom_call.1} parent=35 // pred_region
          %s1949 = smul.u32 32, %s24
        $region52: #{tpu_custom_call.1} parent=35 // pred_fallthru
          _
      $region36: #{tpu_custom_call.1} parent=5 // pred_fallthru
        _
      %p1950 = scmp.le.s32.totalorder 2, %s13
      // Predicated region
      $region53: #{tpu_custom_call.1} parent=5 // pred_check
        %p1951 = pneg %p1950
      $region54: #{tpu_custom_call.1} parent=5 // pred_check_branch
        %1953 = sbr.rel (%p1951) target = $region56
      $region55: #{tpu_custom_call.1} parent=5 // pred_region
        %s1954 = ssub.s32 %s13, 2
        // Predicated region
        $region57: #{tpu_custom_call.1} parent=55 // pred_check
          %p1955 = pneg %p179
        $region58: #{tpu_custom_call.1} parent=55 // pred_check_branch
          %1957 = sbr.rel (%p1955) target = $region60
        $region59: #{tpu_custom_call.1} parent=55 // pred_region
          %s1958 = smul.u32 32, %s27
          %p1959 = scmp.lt.s32.totalorder %s26, 1
          %s1960 = scalar_select %p1959, %s26, 1
          %p1961 = scmp.lt.s32.totalorder %s1958, 31
          %s1962 = scalar_select %p1961, %s1958, 31
          %s1963 = smul.addr %s1960, 96
          %s1964 = sadd.s32 %s1962, %s1963
          %s1965 = smul.addr %s1964, 4
          %s1966 = scalar_lea.vmem %s4, %s1965
        $region60: #{tpu_custom_call.1} parent=55 // pred_fallthru
          _
      $region56: #{tpu_custom_call.1} parent=5 // pred_fallthru
        _
    $region6: #{tpu_custom_call.1} parent=1 // loop_footer
      %s17 = sadd.s32 1, %s13
    $region7: #{tpu_custom_call.1} parent=1 // loop_footer_branch
      %12 = sbr.rel target = $region3
    $region8: #{tpu_custom_call.1} parent=1 // loop_exit
      _
    %1967 = vsyncpa [#allocation5], 1
    %s1968 = scalar_lea.sflag [#allocation5], 1
    %1969 = vsyncpa %s1968, 1

</llo_original>
